<compile_context>
chip_gen: v6e
topology: v6e:2x2x1
jax: 0.10.0
libtpu: 0.0.40
codegen_flags: <defaults>
</compile_context>

<pallas_src>
import functools

import jax
import jax.numpy as jnp
import numpy as np
from jax.experimental import pallas as pl
from jax.experimental.pallas import tpu as pltpu


# Channel layout of a YOLO object vector (D = 11):
#   [x1, y1, x2, y2, color_onehot(3), shape_onehot(3), objectness]
_COLOR_OFFSET = 4
_SHAPE_OFFSET = 7

_TB_MAX = 1024                                  # batch rows per grid step
_PRECISION = jax.lax.Precision.HIGHEST          # full-f32 MXU passes


def _round_up(x, m):
    return ((x + m - 1) // m) * m


# ----------------------------------------------------------------------------
# Fused Pallas kernel
# ----------------------------------------------------------------------------

def _make_fused_kernel(flags, N, a_pad, closeby_params, fuzzy_params):
    """Kernel over one batch tile.

    Operand order (all constants are compile-time-built operands, resident in
    VMEM across the whole grid because their index_map is constant):
        z (tb, N*D), [G], [M_geo], [M_lin], [M_close], [S], out (tb, a_pad)
    """
    has_gather, has_pair, has_lin, has_close = flags
    w_cb, b_cb = closeby_params
    _, b_fz = fuzzy_params

    def kernel(*refs):
        refs = list(refs)
        z_ref = refs.pop(0)
        g_ref = refs.pop(0) if has_gather else None
        geo_ref = refs.pop(0) if has_pair else None
        lin_ref = refs.pop(0) if has_lin else None
        close_ref = refs.pop(0) if has_close else None
        s_ref = refs.pop(0) if has_pair else None
        out_ref = refs.pop(0)

        z = z_ref[...].astype(jnp.float32)              # (tb, N*D), one cast

        # --- color / shape / in: one constant 0/1-matrix gather on the MXU --
        if has_gather:
            out = jnp.dot(z, g_ref[...], precision=_PRECISION,
                          preferred_element_type=jnp.float32)      # (tb, a_pad)
        else:
            out = jnp.zeros((z.shape[0], a_pad), jnp.float32)

        # --- pairwise predicates: dense geometry + ONE batched sigmoid ------
        if has_pair:
            geo = jnp.dot(z, geo_ref[...], precision=_PRECISION,
                          preferred_element_type=jnp.float32)      # (tb, 4N)
            area = geo[:, 2 * N:3 * N] * geo[:, 3 * N:]            # (tb, N)
            feats = jnp.concatenate([geo[:, :2 * N], area], axis=1)  # (tb, 3N)

            cols = []
            if has_lin:     # above / leftof / larger: affine in [cx|cy|area]
                cols.append(
                    jnp.dot(feats, lin_ref[...], precision=_PRECISION,
                            preferred_element_type=jnp.float32) + b_fz)
            if has_close:   # closeby: logistic regression on center distance
                d = jnp.dot(feats, close_ref[...], precision=_PRECISION,
                            preferred_element_type=jnp.float32)    # (tb, 2*ncp)
                ncp = d.shape[1] // 2
                dist = jnp.sqrt(d[:, :ncp] ** 2 + d[:, ncp:] ** 2 + 1e-12)
                cols.append(w_cb * dist + b_cb)

            pre = cols[0] if len(cols) == 1 else jnp.concatenate(cols, axis=1)
            vals = jax.nn.sigmoid(pre)                  # ONE batched sigmoid
            out = out + jnp.dot(vals, s_ref[...], precision=_PRECISION,
                                preferred_element_type=jnp.float32)

        out_ref[...] = out          # single lane-dense, unmasked store

    return kernel


def _build_constant_matrices(schedule, N, D, a_pad, fuzzy_params):
    """Build the compile-time constant matrices for a static atom schedule."""
    C = N * D
    w_fz, _ = fuzzy_params

    gather_entries = []       # (input_row, atom_col)
    lin_entries = []          # ({feat_idx: coeff}, atom_col)
    close_entries = []        # (obj_i, obj_j, atom_col)

    def _acc(d, key, val):
        d[key] = d.get(key, 0.0) + val

    for k, (pred, i, j, attr) in enumerate(schedule):
        if pred == 'color':
            gather_entries.append((i * D + _COLOR_OFFSET + attr, k))
        elif pred == 'shape':
            gather_entries.append((i * D + _SHAPE_OFFSET + attr, k))
        elif pred == 'in':
            gather_entries.append((i * D + (D - 1), k))
        elif pred == 'above':          # sigmoid(w*(cy_j - cy_i) + b)
            c = {}
            _acc(c, N + j, w_fz)
            _acc(c, N + i, -w_fz)
            lin_entries.append((c, k))
        elif pred == 'leftof':         # sigmoid(w*(cx_j - cx_i) + b)
            c = {}
            _acc(c, j, w_fz)
            _acc(c, i, -w_fz)
            lin_entries.append((c, k))
        elif pred == 'larger':         # sigmoid(w*(area_i - area_j) + b)
            c = {}
            _acc(c, 2 * N + i, w_fz)
            _acc(c, 2 * N + j, -w_fz)
            lin_entries.append((c, k))
        elif pred == 'closeby':
            close_entries.append((i, j, k))
        # unknown predicate -> atom column stays exactly 0

    has_gather = bool(gather_entries)
    n_lin, nc = len(lin_entries), len(close_entries)
    has_lin, has_close = n_lin > 0, nc > 0
    has_pair = has_lin or has_close

    mats = []
    if has_gather:
        G = np.zeros((C, a_pad), np.float32)
        for row, k in gather_entries:
            G[row, k] = 1.0
        mats.append(G)

    if has_pair:
        # geo = z @ M_geo  ->  [cx(N) | cy(N) | dx(N) | dy(N)]
        M_geo = np.zeros((C, 4 * N), np.float32)
        for o in range(N):
            M_geo[o * D + 0, o] = 0.5
            M_geo[o * D + 2, o] = 0.5
            M_geo[o * D + 1, N + o] = 0.5
            M_geo[o * D + 3, N + o] = 0.5
            M_geo[o * D + 0, 2 * N + o] = -1.0
            M_geo[o * D + 2, 2 * N + o] = 1.0
            M_geo[o * D + 1, 3 * N + o] = -1.0
            M_geo[o * D + 3, 3 * N + o] = 1.0
        mats.append(M_geo)

        s_entries = []
        row_off = 0
        if has_lin:
            n_lin_pad = _round_up(n_lin, 8)
            M_lin = np.zeros((3 * N, n_lin_pad), np.float32)
            for p, (coeffs, k) in enumerate(lin_entries):
                for f, c in coeffs.items():
                    M_lin[f, p] = c
                s_entries.append((row_off + p, k))
            mats.append(M_lin)
            row_off += n_lin_pad
        if has_close:
            nc_pad = _round_up(nc, 8)
            M_close = np.zeros((3 * N, 2 * nc_pad), np.float32)
            for p, (i, j, k) in enumerate(close_entries):
                M_close[i, p] += 1.0
                M_close[j, p] -= 1.0
                M_close[N + i, nc_pad + p] += 1.0
                M_close[N + j, nc_pad + p] -= 1.0
                s_entries.append((row_off + p, k))
            mats.append(M_close)
            row_off += nc_pad

        S = np.zeros((row_off, a_pad), np.float32)   # pair value -> atom column
        for r, k in s_entries:
            S[r, k] = 1.0
        mats.append(S)

    flags = (has_gather, has_pair, has_lin, has_close)
    return flags, mats


@functools.lru_cache(maxsize=None)
def _build_fused_fn(schedule, B_pad, tb, N, D, closeby_params, fuzzy_params):
    """Compile (and cache) the fused valuation call for a fixed atom schedule."""
    n_atoms = len(schedule)
    a_pad = max(128, _round_up(n_atoms, 128))        # lane-dense output width
    C = N * D

    flags, mats = _build_constant_matrices(schedule, N, D, a_pad, fuzzy_params)
    kernel = _make_fused_kernel(flags, N, a_pad, closeby_params, fuzzy_params)

    in_specs = [pl.BlockSpec((tb, C), lambda i: (i, 0))]
    for m in mats:                                    # constants: block fixed at (0,0)
        in_specs.append(pl.BlockSpec(m.shape, lambda i: (0, 0)))

    call = pl.pallas_call(
        kernel,
        out_shape=jax.ShapeDtypeStruct((B_pad, a_pad), jnp.float32),
        grid=(B_pad // tb,),
        in_specs=in_specs,
        out_specs=pl.BlockSpec((tb, a_pad), lambda i: (i, 0)),
        compiler_params=pltpu.CompilerParams(
            dimension_semantics=("parallel",)),       # megacore / v7x 2-TC sharding
    )

    mats_dev = tuple(jnp.asarray(m) for m in mats)

    def fn(z_flat):                                   # (B_pad, N*D)
        return call(z_flat, *mats_dev)

    return jax.jit(fn)


# ----------------------------------------------------------------------------
# Minimal language / atom structures (mirror the PyTorch module's expectations)
# ----------------------------------------------------------------------------

class DType:
    def __init__(self, name):
        self.name = name


class Term:
    def __init__(self, name, dtype):
        self.name = name
        self.dtype = dtype


class Predicate:
    def __init__(self, name):
        self.name = name


class Atom:
    def __init__(self, pred, terms):
        self.pred = pred
        self.terms = terms


class Language:
    def __init__(self, num_objects=4):
        obj_dt, col_dt, shp_dt, img_dt = (DType('object'), DType('color'),
                                          DType('shape'), DType('image'))
        self.colors = [Term(c, col_dt) for c in ['red', 'yellow', 'blue']]
        self.shapes = [Term(s, shp_dt) for s in ['square', 'circle', 'triangle']]
        self.objects = [Term('obj%d' % i, obj_dt) for i in range(num_objects)]
        self.images = [Term('img', img_dt)]
        self._by_dtype = {'color': self.colors, 'shape': self.shapes,
                          'object': self.objects, 'image': self.images}

    def get_by_dtype_name(self, name):
        return self._by_dtype[name]

    def term_index(self, term):
        return self._by_dtype[term.dtype.name].index(term)


# ----------------------------------------------------------------------------
# The valuation module (JAX / Pallas version of YOLOValuationModule)
# ----------------------------------------------------------------------------

class YOLOValuationModule:
    """forward(zs, atom) keeps the original per-atom semantics ((B,) output);
    forward_atoms(zs, atoms) evaluates many atoms with ONE fused kernel and
    returns the dense (B, n_atoms) probability slab."""

    def __init__(self, lang, dataset='closeby'):
        self.lang = lang
        self.dataset = dataset
        # TODO(synk): src/weights/neural_predicates/{closeby,online}_pretrain.pt
        # cannot be loaded here; logistic-regression parameters are deterministic
        # stand-ins folded into the constant kernel matrices.
        self.closeby_params = (-12.0, 3.0)   # (w, b) on center distance
        self.fuzzy_params = (8.0, 0.0)       # (sharpness, bias) for above/leftof/larger
        # TODO(synk): the 'online' neural predicate (online-pair dataset) is an
        # MLP with pretrained weights and is not implemented; it falls back to 0.
        self.pred_names = frozenset(
            ['color', 'shape', 'in', 'closeby', 'above', 'leftof', 'larger'])
        self.attrs = self.init_attr_encodings()

    def init_attr_encodings(self):
        attrs = {}
        for dtype_name in ['color', 'shape']:
            terms = self.lang.get_by_dtype_name(dtype_name)
            num_classes = len(terms)
            for term in terms:
                idx = self.lang.term_index(term)
                attrs[term] = jax.nn.one_hot(idx, num_classes, dtype=jnp.float32)
        return attrs

    # ---- atom -> static schedule entry (pred, obj_i, obj_j, attr_idx) ----
    def _atom_to_op(self, atom):
        name = atom.pred.name
        if name not in self.pred_names:
            return ('zero', 0, 0, 0)
        if name in ('color', 'shape'):
            obj_t, attr_t = atom.terms
            return (name, self.lang.term_index(obj_t), 0,
                    self.lang.term_index(attr_t))
        if name == 'in':
            return (name, self.lang.term_index(atom.terms[0]), 0, 0)
        o1, o2 = atom.terms[0], atom.terms[1]
        return (name, self.lang.term_index(o1), self.lang.term_index(o2), 0)

    def forward_atoms(self, zs, atoms):
        """Evaluate all `atoms` on `zs` with a single fused Pallas launch.

        Returns a dense (B, n_atoms) float32 array (one slice; split host-side
        if per-atom vectors are needed)."""
        zs = jnp.asarray(zs)
        if zs.ndim == 2:                      # (N, D) -> (1, N, D) (unsqueeze)
            zs = zs[None]
        B, N, D = zs.shape
        n_atoms = len(atoms)
        if n_atoms == 0:
            return jnp.zeros((B, 0), jnp.float32)

        schedule = tuple(self._atom_to_op(a) for a in atoms)
        for pred, _, _, attr in schedule:
            if pred == 'color':
                assert _COLOR_OFFSET + attr < D, 'color index out of range'
            elif pred == 'shape':
                assert _SHAPE_OFFSET + attr < D, 'shape index out of range'

        tb = min(_TB_MAX, _round_up(B, 8))    # batch tile, multiple of 8
        B_pad = _round_up(B, tb)
        fn = _build_fused_fn(schedule, B_pad, tb, N, D,
                             self.closeby_params, self.fuzzy_params)

        z_flat = zs.reshape(B, N * D)
        if B_pad != B:
            z_flat = jnp.pad(z_flat, ((0, B_pad - B), (0, 0)))
        slab = fn(z_flat)                     # (B_pad, a_pad), one launch
        return slab[:B, :n_atoms]             # single slice, dense result

    def forward(self, zs, atom):
        """Probability of one atom, shape (B,) — same semantics as PyTorch."""
        return self.forward_atoms(zs, [atom])[:, 0]

    def ground_to_tensor(self, term, zs):
        """Kept for API compatibility (the fused path uses indices directly)."""
        term_index = self.lang.term_index(term)
        if term.dtype.name == 'object':
            out = zs[:, term_index]
            if out.ndim == 1:
                out = out[None, :]
            return out
        elif term.dtype.name in ('color', 'shape'):
            return self.attrs[term]
        elif term.dtype.name == 'image':
            return None
        else:
            raise AssertionError('Invalid datatype of the given term: %s:%s'
                                 % (term.name, term.dtype.name))


# ----------------------------------------------------------------------------
# Demo / smoke test
# ----------------------------------------------------------------------------

if __name__ == "__main__":
    B, N, D = 2, 4, 11
    key = jax.random.PRNGKey(0)
    zs = jax.random.uniform(key, (B, N, D), dtype=jnp.float32)

    lang = Language(num_objects=N)
    module = YOLOValuationModule(lang, dataset='closeby')

    obj0, obj1 = lang.objects[0], lang.objects[1]
    red = lang.colors[0]
    circle = lang.shapes[1]
    img = lang.images[0]

    atoms = [
        Atom(Predicate('color'),   [obj1, red]),
        Atom(Predicate('shape'),   [obj0, circle]),
        Atom(Predicate('in'),      [obj0, img]),
        Atom(Predicate('closeby'), [obj0, obj1]),
        Atom(Predicate('above'),   [obj0, obj1]),
        Atom(Predicate('leftof'),  [obj0, obj1]),
        Atom(Predicate('larger'),  [obj0, obj1]),
        Atom(Predicate('unknown_pred'), [obj0, obj1]),   # falls back to zeros
    ]

    # Fused path: ONE pallas_call evaluates every atom -> dense (B, n_atoms).
    slab = module.forward_atoms(zs, atoms)
    slab = jax.block_until_ready(slab)
    assert slab.shape == (B, len(atoms))
    assert slab.dtype == jnp.float32

    # Pure-JAX reference for correctness.
    def ref_value(atom):
        name = atom.pred.name
        w_cb, b_cb = module.closeby_params
        w_fz, b_fz = module.fuzzy_params

        def z(t):
            return zs[:, lang.term_index(t)]

        def cx(t):
            return (z(t)[:, 0] + z(t)[:, 2]) * 0.5

        def cy(t):
            return (z(t)[:, 1] + z(t)[:, 3]) * 0.5

        def area(t):
            return (z(t)[:, 2] - z(t)[:, 0]) * (z(t)[:, 3] - z(t)[:, 1])

        if name == 'color':
            o, a = atom.terms
            return z(o)[:, _COLOR_OFFSET + lang.term_index(a)]
        if name == 'shape':
            o, a = atom.terms
            return z(o)[:, _SHAPE_OFFSET + lang.term_index(a)]
        if name == 'in':
            return z(atom.terms[0])[:, D - 1]
        if name in ('closeby', 'above', 'leftof', 'larger'):
            o1, o2 = atom.terms[0], atom.terms[1]
            if name == 'closeby':
                d = jnp.sqrt((cx(o1) - cx(o2)) ** 2 + (cy(o1) - cy(o2)) ** 2 + 1e-12)
                return jax.nn.sigmoid(w_cb * d + b_cb)
            if name == 'above':
                return jax.nn.sigmoid(w_fz * (cy(o2) - cy(o1)) + b_fz)
            if name == 'leftof':
                return jax.nn.sigmoid(w_fz * (cx(o2) - cx(o1)) + b_fz)
            return jax.nn.sigmoid(w_fz * (area(o1) - area(o2)) + b_fz)
        return jnp.zeros((B,), jnp.float32)

    # Tolerance leaves margin for MXU f32 matmul accumulation order.
    for k, atom in enumerate(atoms):
        np.testing.assert_allclose(np.asarray(slab[:, k]),
                                   np.asarray(ref_value(atom)),
                                   rtol=5e-3, atol=5e-3)

    # Single-atom forward (same fused kernel path, specialized & cached).
    single = jax.block_until_ready(module.forward(zs, atoms[3]))
    assert single.shape == (B,)
    np.testing.assert_allclose(np.asarray(single), np.asarray(slab[:, 3]),
                               rtol=1e-5, atol=1e-5)

    print("KERNEL_OK")
</pallas_src>

<mosaic_0001>
module attributes {stable_mosaic.version = 11 : i64} {
  func.func @kernel(%arg0: i32, %arg1: memref<8x44xf32, #tpu.memory_space<vmem>>, %arg2: memref<44x128xf32, #tpu.memory_space<vmem>>, %arg3: memref<44x16xf32, #tpu.memory_space<vmem>>, %arg4: memref<12x8xf32, #tpu.memory_space<vmem>>, %arg5: memref<12x16xf32, #tpu.memory_space<vmem>>, %arg6: memref<16x128xf32, #tpu.memory_space<vmem>>, %arg7: memref<8x128xf32, #tpu.memory_space<vmem>>) attributes {dimension_semantics = [#tpu.dimension_semantics<parallel>], iteration_bounds = array<i64: 1>, scalar_prefetch = 0 : i64, scratch_operands = 0 : i64, tpu.core_type = #tpu.core_type<tc>, window_params = [{transform_indices = @transform_0, window_bounds = array<i64: 8, 44>}, {pipeline_mode = #tpu.pipeline_mode<synchronous>, transform_indices = @transform_1, window_bounds = array<i64: 44, 128>}, {pipeline_mode = #tpu.pipeline_mode<synchronous>, transform_indices = @transform_2, window_bounds = array<i64: 44, 16>}, {pipeline_mode = #tpu.pipeline_mode<synchronous>, transform_indices = @transform_3, window_bounds = array<i64: 12, 8>}, {pipeline_mode = #tpu.pipeline_mode<synchronous>, transform_indices = @transform_4, window_bounds = array<i64: 12, 16>}, {pipeline_mode = #tpu.pipeline_mode<synchronous>, transform_indices = @transform_5, window_bounds = array<i64: 16, 128>}, {transform_indices = @transform_6, window_bounds = array<i64: 8, 128>}]} {
    %c0 = arith.constant 0 : index
    %c0_0 = arith.constant 0 : index
    %0 = vector.load %arg1[%c0, %c0_0] : memref<8x44xf32, #tpu.memory_space<vmem>>, vector<8x44xf32>
    %c0_1 = arith.constant 0 : index
    %c0_2 = arith.constant 0 : index
    %1 = vector.load %arg2[%c0_1, %c0_2] : memref<44x128xf32, #tpu.memory_space<vmem>>, vector<44x128xf32>
    %cst = arith.constant dense<0.000000e+00> : vector<8x128xf32>
    %2 = tpu.matmul %0, %1, %cst {dimension_numbers = #tpu.dot_dimension_numbers<[1], [0], [0], [1], [0, 0, 1, 1], [], []>, precision = #tpu.contract_precision<fp32>} : vector<8x44xf32>, vector<44x128xf32>, vector<8x128xf32> -> vector<8x128xf32>
    %c0_3 = arith.constant 0 : index
    %c0_4 = arith.constant 0 : index
    %3 = vector.load %arg3[%c0_3, %c0_4] : memref<44x16xf32, #tpu.memory_space<vmem>>, vector<44x16xf32>
    %cst_5 = arith.constant dense<0.000000e+00> : vector<8x16xf32>
    %4 = tpu.matmul %0, %3, %cst_5 {dimension_numbers = #tpu.dot_dimension_numbers<[1], [0], [0], [1], [0, 0, 1, 1], [], []>, precision = #tpu.contract_precision<fp32>} : vector<8x44xf32>, vector<44x16xf32>, vector<8x16xf32> -> vector<8x16xf32>
    %5 = vector.extract_strided_slice %4 {offsets = [0, 8], sizes = [8, 4], strides = [1, 1]} : vector<8x16xf32> to vector<8x4xf32>
    %6 = vector.extract_strided_slice %4 {offsets = [0, 12], sizes = [8, 4], strides = [1, 1]} : vector<8x16xf32> to vector<8x4xf32>
    %7 = arith.mulf %5, %6 : vector<8x4xf32>
    %8 = vector.extract_strided_slice %4 {offsets = [0, 0], sizes = [8, 8], strides = [1, 1]} : vector<8x16xf32> to vector<8x8xf32>
    %9 = tpu.concatenate %8, %7 in 1 : vector<8x8xf32>, vector<8x4xf32> -> vector<8x12xf32>
    %c0_6 = arith.constant 0 : index
    %c0_7 = arith.constant 0 : index
    %10 = vector.load %arg4[%c0_6, %c0_7] : memref<12x8xf32, #tpu.memory_space<vmem>>, vector<12x8xf32>
    %cst_8 = arith.constant dense<0.000000e+00> : vector<8x8xf32>
    %11 = tpu.matmul %9, %10, %cst_8 {dimension_numbers = #tpu.dot_dimension_numbers<[1], [0], [0], [1], [0, 0, 1, 1], [], []>, precision = #tpu.contract_precision<fp32>} : vector<8x12xf32>, vector<12x8xf32>, vector<8x8xf32> -> vector<8x8xf32>
    %cst_9 = arith.constant 0.000000e+00 : f32
    %12 = vector.broadcast %cst_9 : f32 to vector<8x8xf32>
    %13 = arith.addf %11, %12 : vector<8x8xf32>
    %c0_10 = arith.constant 0 : index
    %c0_11 = arith.constant 0 : index
    %14 = vector.load %arg5[%c0_10, %c0_11] : memref<12x16xf32, #tpu.memory_space<vmem>>, vector<12x16xf32>
    %cst_12 = arith.constant dense<0.000000e+00> : vector<8x16xf32>
    %15 = tpu.matmul %9, %14, %cst_12 {dimension_numbers = #tpu.dot_dimension_numbers<[1], [0], [0], [1], [0, 0, 1, 1], [], []>, precision = #tpu.contract_precision<fp32>} : vector<8x12xf32>, vector<12x16xf32>, vector<8x16xf32> -> vector<8x16xf32>
    %16 = vector.extract_strided_slice %15 {offsets = [0, 0], sizes = [8, 8], strides = [1, 1]} : vector<8x16xf32> to vector<8x8xf32>
    %17 = arith.mulf %16, %16 : vector<8x8xf32>
    %18 = vector.extract_strided_slice %15 {offsets = [0, 8], sizes = [8, 8], strides = [1, 1]} : vector<8x16xf32> to vector<8x8xf32>
    %19 = arith.mulf %18, %18 : vector<8x8xf32>
    %20 = arith.addf %17, %19 : vector<8x8xf32>
    %cst_13 = arith.constant 9.99999996E-13 : f32
    %21 = vector.broadcast %cst_13 : f32 to vector<8x8xf32>
    %22 = arith.addf %20, %21 : vector<8x8xf32>
    %23 = math.sqrt %22 : vector<8x8xf32>
    %cst_14 = arith.constant -1.200000e+01 : f32
    %24 = vector.broadcast %cst_14 : f32 to vector<8x8xf32>
    %25 = arith.mulf %24, %23 : vector<8x8xf32>
    %cst_15 = arith.constant 3.000000e+00 : f32
    %26 = vector.broadcast %cst_15 : f32 to vector<8x8xf32>
    %27 = arith.addf %25, %26 : vector<8x8xf32>
    %28 = tpu.concatenate %13, %27 in 1 : vector<8x8xf32>, vector<8x8xf32> -> vector<8x16xf32>
    %29 = arith.negf %28 : vector<8x16xf32>
    %30 = math.exp %29 : vector<8x16xf32>
    %cst_16 = arith.constant 1.000000e+00 : f32
    %31 = vector.broadcast %cst_16 : f32 to vector<8x16xf32>
    %32 = arith.addf %31, %30 : vector<8x16xf32>
    %33 = arith.divf %31, %32 : vector<8x16xf32>
    %c0_17 = arith.constant 0 : index
    %c0_18 = arith.constant 0 : index
    %34 = vector.load %arg6[%c0_17, %c0_18] : memref<16x128xf32, #tpu.memory_space<vmem>>, vector<16x128xf32>
    %cst_19 = arith.constant dense<0.000000e+00> : vector<8x128xf32>
    %35 = tpu.matmul %33, %34, %cst_19 {dimension_numbers = #tpu.dot_dimension_numbers<[1], [0], [0], [1], [0, 0, 1, 1], [], []>, precision = #tpu.contract_precision<fp32>} : vector<8x16xf32>, vector<16x128xf32>, vector<8x128xf32> -> vector<8x128xf32>
    %36 = arith.addf %2, %35 : vector<8x128xf32>
    %c0_20 = arith.constant 0 : index
    %c0_21 = arith.constant 0 : index
    %37 = vector.load %arg7[%c0_20, %c0_21] : memref<8x128xf32, #tpu.memory_space<vmem>>, vector<8x128xf32>
    tpu.vector_store %arg7[%c0_20, %c0_21], %36 {strides = array<i32>} : memref<8x128xf32, #tpu.memory_space<vmem>>, vector<8x128xf32>,
    return
  }
  func.func @transform_0(%arg0: i32) -> (i32, i32) {
    %c0_i32 = arith.constant 0 : i32
    %c0_i32_0 = arith.constant 0 : i32
    return %arg0, %c0_i32 : i32, i32
  }
  func.func @transform_1(%arg0: i32) -> (i32, i32) {
    %c0_i32 = arith.constant 0 : i32
    %c0_i32_0 = arith.constant 0 : i32
    %c0_i32_1 = arith.constant 0 : i32
    return %c0_i32, %c0_i32_0 : i32, i32
  }
  func.func @transform_2(%arg0: i32) -> (i32, i32) {
    %c0_i32 = arith.constant 0 : i32
    %c0_i32_0 = arith.constant 0 : i32
    %c0_i32_1 = arith.constant 0 : i32
    return %c0_i32, %c0_i32_0 : i32, i32
  }
  func.func @transform_3(%arg0: i32) -> (i32, i32) {
    %c0_i32 = arith.constant 0 : i32
    %c0_i32_0 = arith.constant 0 : i32
    %c0_i32_1 = arith.constant 0 : i32
    return %c0_i32, %c0_i32_0 : i32, i32
  }
  func.func @transform_4(%arg0: i32) -> (i32, i32) {
    %c0_i32 = arith.constant 0 : i32
    %c0_i32_0 = arith.constant 0 : i32
    %c0_i32_1 = arith.constant 0 : i32
    return %c0_i32, %c0_i32_0 : i32, i32
  }
  func.func @transform_5(%arg0: i32) -> (i32, i32) {
    %c0_i32 = arith.constant 0 : i32
    %c0_i32_0 = arith.constant 0 : i32
    %c0_i32_1 = arith.constant 0 : i32
    return %c0_i32, %c0_i32_0 : i32, i32
  }
  func.func @transform_6(%arg0: i32) -> (i32, i32) {
    %c0_i32 = arith.constant 0 : i32
    %c0_i32_0 = arith.constant 0 : i32
    return %arg0, %c0_i32 : i32, i32
  }
}

</mosaic_0001>

<llo_original>
// kernel: fn.1
$region0: #{fn.1}
  #allocation0 [shape = 'u32[]', space=smem, size = 0x4, offset = 0x4, fixed_abs, tag = 'smem constant byte address 0x4 - core index']
  #allocation1 [shape = 'u32[144,128]{1,0:T(1,128)}', space=vmem, size = 0x12000, scoped, tag = 'internal scratch']
  %s0 = inlined_call_operand.hbm [shape: f32[8,44], index: 0, kind: input, shape index: {}]
  %s1 = inlined_call_operand.hbm [shape: f32[44,128], index: 1, kind: input, shape index: {}]
  %s2 = inlined_call_operand.hbm [shape: f32[44,16], index: 2, kind: input, shape index: {}]
  %s3 = inlined_call_operand.hbm [shape: f32[12,8], index: 3, kind: input, shape index: {}]
  %s4 = inlined_call_operand.hbm [shape: f32[12,16], index: 4, kind: input, shape index: {}]
  %s5 = inlined_call_operand.hbm [shape: f32[16,128], index: 5, kind: input, shape index: {}]
  %s6 = inlined_call_operand.hbm [shape: f32[8,128], index: 6, kind: output, shape index: {}]
  %s7 = sld [smem:[#allocation0]]
  $region58: #{fn.1} parent=0
    _
  %s9 = ssub.s32 1, %s7
  %s10 = scalar_select 0, %s9, %s7
  $region1: #{fn.1} parent=0
    #allocation2 [shape = 'u8[4096]{0}', space=vmem, size = 0x1000, scoped, tag = 'input window, operand 0, single buffered']
    #allocation3 [shape = 's32[1]{0}', space=sflag, size = 0x4, scoped, tag = 'scoped memory for fn.1']
    #allocation4 [shape = 's32[1]{0}', space=sflag, size = 0x4, scoped, tag = 'scoped memory for fn.1']
    #allocation5 [shape = 'u8[24576]{0}', space=vmem, size = 0x6000, scoped, tag = 'input window, operand 1, single buffered']
    #allocation6 [shape = 's32[1]{0}', space=sflag, size = 0x4, scoped, tag = 'scoped memory for fn.1']
    #allocation7 [shape = 'u8[24576]{0}', space=vmem, size = 0x6000, scoped, tag = 'input window, operand 2, single buffered']
    #allocation8 [shape = 'u8[8192]{0}', space=vmem, size = 0x2000, scoped, tag = 'input window, operand 3, single buffered']
    #allocation9 [shape = 's32[1]{0}', space=sflag, size = 0x4, scoped, tag = 'scoped memory for fn.1']
    #allocation10 [shape = 'u8[8192]{0}', space=vmem, size = 0x2000, scoped, tag = 'input window, operand 4, single buffered']
    #allocation11 [shape = 'u8[8192]{0}', space=vmem, size = 0x2000, scoped, tag = 'input window, operand 5, single buffered']
    #allocation12 [shape = 's32[1]{0}', space=sflag, size = 0x4, scoped, tag = 'scoped memory for fn.1']
    #allocation13 [shape = 'u8[4096]{0}', space=vmem, size = 0x1000, scoped, tag = 'output window, operand 0, single buffered']
    %11 = vsyncpa [#allocation3], 0
    %12 = vsyncpa [#allocation6], 0
    %13 = vsyncpa [#allocation9], 0
    %14 = vsyncpa [#allocation12], 0
    %15 = vsyncpa [#allocation4], 0
    // Predicated region
    $region2: #{fn.1} parent=1 // pred_check
      _
    $region3: #{fn.1} parent=1 // pred_check_branch
      %17 = sbr.rel (0) target = $region5
    $region4: #{fn.1} parent=1 // pred_region
      %s19 = ssub.s32 128, 128
      %20 = vsyncadd [#allocation3], %s19
      %s22 = sshll.u32 [#allocation2], 4
      %s23 = int_to_ptr.vmem [resolvable:$true] %s22
      %25 = dma.hbm_to_vmem [thread:$0]  %s0, 128, %s23, [#allocation3]
    $region5: #{fn.1} parent=1 // pred_fallthru
      _
    // Predicated region
    $region6: #{fn.1} parent=1 // pred_check
      _
    $region7: #{fn.1} parent=1 // pred_check_branch
      %27 = sbr.rel (0) target = $region9
    $region8: #{fn.1} parent=1 // pred_region
      %s29 = ssub.s32 768, 768
      %30 = vsyncadd [#allocation6], %s29
      %s31 = sshll.u32 [#allocation5], 4
      %s32 = int_to_ptr.vmem [resolvable:$true] %s31
      %37 = dma.hbm_to_vmem [thread:$0]  %s1, 768, %s32, [#allocation6], 128, 128, 8
    $region9: #{fn.1} parent=1 // pred_fallthru
      _
    // Predicated region
    $region10: #{fn.1} parent=1 // pred_check
      _
    $region11: #{fn.1} parent=1 // pred_check_branch
      %39 = sbr.rel (0) target = $region13
    $region12: #{fn.1} parent=1 // pred_region
      %s41 = ssub.s32 768, 768
      %42 = vsyncadd [#allocation6], %s41
      %s43 = sshll.u32 [#allocation7], 4
      %s44 = int_to_ptr.vmem [resolvable:$true] %s43
      %49 = dma.hbm_to_vmem [thread:$0]  %s2, 768, %s44, [#allocation6], 128, 128, 8
    $region13: #{fn.1} parent=1 // pred_fallthru
      _
    // Predicated region
    $region14: #{fn.1} parent=1 // pred_check
      _
    $region15: #{fn.1} parent=1 // pred_check_branch
      %51 = sbr.rel (0) target = $region17
    $region16: #{fn.1} parent=1 // pred_region
      %s53 = ssub.s32 256, 256
      %54 = vsyncadd [#allocation9], %s53
      %s55 = sshll.u32 [#allocation8], 4
      %s56 = int_to_ptr.vmem [resolvable:$true] %s55
      %61 = dma.hbm_to_vmem [thread:$0]  %s3, 256, %s56, [#allocation9], 128, 128, 8
    $region17: #{fn.1} parent=1 // pred_fallthru
      _
    // Predicated region
    $region18: #{fn.1} parent=1 // pred_check
      _
    $region19: #{fn.1} parent=1 // pred_check_branch
      %63 = sbr.rel (0) target = $region21
    $region20: #{fn.1} parent=1 // pred_region
      %s65 = ssub.s32 256, 256
      %66 = vsyncadd [#allocation9], %s65
      %s67 = sshll.u32 [#allocation10], 4
      %s68 = int_to_ptr.vmem [resolvable:$true] %s67
      %73 = dma.hbm_to_vmem [thread:$0]  %s4, 256, %s68, [#allocation9], 128, 128, 8
    $region21: #{fn.1} parent=1 // pred_fallthru
      _
    // Predicated region
    $region22: #{fn.1} parent=1 // pred_check
      _
    $region23: #{fn.1} parent=1 // pred_check_branch
      %75 = sbr.rel (0) target = $region25
    $region24: #{fn.1} parent=1 // pred_region
      %s77 = ssub.s32 256, 256
      %78 = vsyncadd [#allocation12], %s77
      %s79 = sshll.u32 [#allocation11], 4
      %s80 = int_to_ptr.vmem [resolvable:$true] %s79
      %85 = dma.hbm_to_vmem [thread:$0]  %s5, 256, %s80, [#allocation12], 128, 128, 8
    $region25: #{fn.1} parent=1 // pred_fallthru
      _
    // Predicated region
    $region26: #{fn.1} parent=1 // pred_check
      _
    $region27: #{fn.1} parent=1 // pred_check_branch
      %87 = sbr.rel (0) target = $region29
    $region28: #{fn.1} parent=1 // pred_region
      %88 = dma.done [#allocation3], 128
    $region29: #{fn.1} parent=1 // pred_fallthru
      _
    // Predicated region
    $region30: #{fn.1} parent=1 // pred_check
      _
    $region31: #{fn.1} parent=1 // pred_check_branch
      %90 = sbr.rel (0) target = $region33
    $region32: #{fn.1} parent=1 // pred_region
      %91 = dma.done [#allocation6], 768
    $region33: #{fn.1} parent=1 // pred_fallthru
      _
    // Predicated region
    $region34: #{fn.1} parent=1 // pred_check
      _
    $region35: #{fn.1} parent=1 // pred_check_branch
      %93 = sbr.rel (0) target = $region37
    $region36: #{fn.1} parent=1 // pred_region
      %94 = dma.done [#allocation6], 768
    $region37: #{fn.1} parent=1 // pred_fallthru
      _
    // Predicated region
    $region38: #{fn.1} parent=1 // pred_check
      _
    $region39: #{fn.1} parent=1 // pred_check_branch
      %96 = sbr.rel (0) target = $region41
    $region40: #{fn.1} parent=1 // pred_region
      %97 = dma.done [#allocation9], 256
    $region41: #{fn.1} parent=1 // pred_fallthru
      _
    // Predicated region
    $region42: #{fn.1} parent=1 // pred_check
      _
    $region43: #{fn.1} parent=1 // pred_check_branch
      %99 = sbr.rel (0) target = $region45
    $region44: #{fn.1} parent=1 // pred_region
      %100 = dma.done [#allocation9], 256
    $region45: #{fn.1} parent=1 // pred_fallthru
      _
    // Predicated region
    $region46: #{fn.1} parent=1 // pred_check
      _
    $region47: #{fn.1} parent=1 // pred_check_branch
      %102 = sbr.rel (0) target = $region49
    $region48: #{fn.1} parent=1 // pred_region
      %103 = dma.done [#allocation12], 256
    $region49: #{fn.1} parent=1 // pred_fallthru
      _
    %v104 = vld [vmem:[#allocation2] sm:$0xff]
    %v105 = vld [vmem:[#allocation5] sm:$0xff]
    %v106 = vld [vmem:[#allocation5 + $0x8] sm:$0xff]
    %v107 = vld [vmem:[#allocation5 + $0x10] sm:$0xff]
    %v108 = vld [vmem:[#allocation5 + $0x18] sm:$0xff]
    %v109 = vld [vmem:[#allocation5 + $0x20] sm:$0xff]
    %v110 = vld [vmem:[#allocation5 + $0x28] sm:$0xf]
    %v111 = vld [vmem:[#allocation7] sm:$0xff]
    %v112 = vld [vmem:[#allocation7 + $0x8] sm:$0xff]
    %v113 = vld [vmem:[#allocation7 + $0x10] sm:$0xff]
    %v114 = vld [vmem:[#allocation7 + $0x18] sm:$0xff]
    %v115 = vld [vmem:[#allocation7 + $0x20] sm:$0xff]
    %v116 = vld [vmem:[#allocation7 + $0x28] sm:$0xf]
    %vm117 = vcmask 359424
    %v119 = vsel %vm117, %v104, 0
    %vm121 = vcmask 1043456
    %v123 = vsel %vm121, %v116, 0
    %125 = vmatprep.subr.mxu0 0.0
    %126 = vmatpush1.msra.mxu0 0.0
    %127 = vmatprep.subr.mxu0 0.0
    %128 = vmatpush1.msra.mxu0 0.0
    %129 = vmatprep.subr.mxu0 0.0
    %130 = vmatpush1.msra.mxu0 0.0
    %131 = vmatprep.subr.mxu0 0.0
    %132 = vmatpush1.msra.mxu0 0.0
    %133 = vmatprep.subr.mxu0 0.0
    %134 = vmatpush1.msra.mxu0 0.0
    %135 = vmatprep.subr.mxu0 0.0
    %136 = vmatpush1.msra.mxu0 0.0
    %137 = vmatprep.subr.mxu0 0.0
    %138 = vmatpush1.msra.mxu0 0.0
    %139 = vmatprep.subr.mxu0 0.0
    %140 = vmatpush1.msra.mxu0 0.0
    %141 = vmatprep.subr.mxu0 0.0
    %142 = vmatpush1.msra.mxu0 0.0
    %143 = vmatprep.subr.mxu0 0.0
    %144 = vmatpush1.msra.mxu0 0.0
    %145 = vmatprep.subr.mxu0 0.0
    %v146 = vand.u32 %v123, 4294901760
    %147 = vmatpush1.msra.mxu0 %v146
    %148 = vmatprep.subr.mxu0 0.0
    %v149 = vand.u32 %v115, 4294901760
    %150 = vmatpush1.msra.mxu0 %v149
    %151 = vmatprep.subr.mxu0 0.0
    %v152 = vand.u32 %v114, 4294901760
    %153 = vmatpush1.msra.mxu0 %v152
    %154 = vmatprep.subr.mxu0 0.0
    %v155 = vand.u32 %v113, 4294901760
    %156 = vmatpush1.msra.mxu0 %v155
    %157 = vmatprep.subr.mxu0 0.0
    %v158 = vand.u32 %v112, 4294901760
    %159 = vmatpush1.msra.mxu0 %v158
    %160 = vmatprep.subr.mxu0 0.0
    %v161 = vand.u32 %v111, 4294901760
    %162 = vmatpush1.msra.mxu0 %v161
    %163 = vmatprep.subr.mxu0 0.0
    %164 = vmatpush2.msra.mxu0 0.0
    %165 = vmatprep.subr.mxu0 0.0
    %166 = vmatpush2.msra.mxu0 0.0
    %167 = vmatprep.subr.mxu0 0.0
    %168 = vmatpush2.msra.mxu0 0.0
    %169 = vmatprep.subr.mxu0 0.0
    %170 = vmatpush2.msra.mxu0 0.0
    %171 = vmatprep.subr.mxu0 0.0
    %172 = vmatpush2.msra.mxu0 0.0
    %173 = vmatprep.subr.mxu0 0.0
    %174 = vmatpush2.msra.mxu0 0.0
    %175 = vmatprep.subr.mxu0 0.0
    %176 = vmatpush2.msra.mxu0 0.0
    %177 = vmatprep.subr.mxu0 0.0
    %178 = vmatpush2.msra.mxu0 0.0
    %179 = vmatprep.subr.mxu0 0.0
    %180 = vmatpush2.msra.mxu0 0.0
    %181 = vmatprep.subr.mxu0 0.0
    %182 = vmatpush2.msra.mxu0 0.0
    %183 = vmatprep.subr.mxu0 0.0
    %184 = vmatpush2.msra.mxu0 0.0
    %185 = vmatprep.subr.mxu0 0.0
    %186 = vmatpush2.msra.mxu0 0.0
    %187 = vmatprep.subr.mxu0 0.0
    %188 = vmatpush2.msra.mxu0 0.0
    %189 = vmatprep.subr.mxu0 0.0
    %190 = vmatpush2.msra.mxu0 0.0
    %191 = vmatprep.subr.mxu0 0.0
    %192 = vmatpush2.msra.mxu0 0.0
    %193 = vmatprep.subr.mxu0 0.0
    %194 = vmatpush2.msra.mxu0 0.0
    %195 = vmatprep.mubr.f32.mxu0 0.0
    %v196 = vand.u32 %v119, 4294901760
    %v197 = vsub.f32 %v119, %v196
    %v198 = vand.u32 %v197, 4294901760
    %v199 = vsub.f32 %v197, %v198
    %v200 = vand.u32 %v199, 4294901760
    %201 = vmatmul.mubr.f32.gmra.mxu0 %v200
    %v202 = vpop.f32.mrf.mxu0
    %v203 = vadd.f32 0.0, %v202
    %v204 = vpop.f32.mrf.mxu0
    %205 = vdwg.mxu0
    %206 = vmatprep.subr.mxu0 0.0
    %207 = vmatpush1.msra.mxu0 0.0
    %208 = vmatprep.subr.mxu0 0.0
    %209 = vmatpush1.msra.mxu0 0.0
    %210 = vmatprep.subr.mxu0 0.0
    %211 = vmatpush1.msra.mxu0 0.0
    %212 = vmatprep.subr.mxu0 0.0
    %213 = vmatpush1.msra.mxu0 0.0
    %214 = vmatprep.subr.mxu0 0.0
    %215 = vmatpush1.msra.mxu0 0.0
    %216 = vmatprep.subr.mxu0 0.0
    %217 = vmatpush1.msra.mxu0 0.0
    %218 = vmatprep.subr.mxu0 0.0
    %219 = vmatpush1.msra.mxu0 0.0
    %220 = vmatprep.subr.mxu0 0.0
    %221 = vmatpush1.msra.mxu0 0.0
    %222 = vmatprep.subr.mxu0 0.0
    %223 = vmatpush1.msra.mxu0 0.0
    %224 = vmatprep.subr.mxu0 0.0
    %225 = vmatpush1.msra.mxu0 0.0
    %226 = vmatprep.subr.mxu0 0.0
    %v227 = vand.u32 %v123, 4294901760
    %v228 = vsub.f32 %v123, %v227
    %v229 = vand.u32 %v228, 4294901760
    %v230 = vsub.f32 %v228, %v229
    %v231 = vand.u32 %v230, 4294901760
    %232 = vmatpush1.msra.mxu0 %v231
    %233 = vmatprep.subr.mxu0 0.0
    %v234 = vand.u32 %v115, 4294901760
    %v235 = vsub.f32 %v115, %v234
    %v236 = vand.u32 %v235, 4294901760
    %v237 = vsub.f32 %v235, %v236
    %v238 = vand.u32 %v237, 4294901760
    %239 = vmatpush1.msra.mxu0 %v238
    %240 = vmatprep.subr.mxu0 0.0
    %v241 = vand.u32 %v114, 4294901760
    %v242 = vsub.f32 %v114, %v241
    %v243 = vand.u32 %v242, 4294901760
    %v244 = vsub.f32 %v242, %v243
    %v245 = vand.u32 %v244, 4294901760
    %246 = vmatpush1.msra.mxu0 %v245
    %247 = vmatprep.subr.mxu0 0.0
    %v248 = vand.u32 %v113, 4294901760
    %v249 = vsub.f32 %v113, %v248
    %v250 = vand.u32 %v249, 4294901760
    %v251 = vsub.f32 %v249, %v250
    %v252 = vand.u32 %v251, 4294901760
    %253 = vmatpush1.msra.mxu0 %v252
    %254 = vmatprep.subr.mxu0 0.0
    %v255 = vand.u32 %v112, 4294901760
    %v256 = vsub.f32 %v112, %v255
    %v257 = vand.u32 %v256, 4294901760
    %v258 = vsub.f32 %v256, %v257
    %v259 = vand.u32 %v258, 4294901760
    %260 = vmatpush1.msra.mxu0 %v259
    %261 = vmatprep.subr.mxu0 0.0
    %v262 = vand.u32 %v111, 4294901760
    %v263 = vsub.f32 %v111, %v262
    %v264 = vand.u32 %v263, 4294901760
    %v265 = vsub.f32 %v263, %v264
    %v266 = vand.u32 %v265, 4294901760
    %267 = vmatpush1.msra.mxu0 %v266
    %268 = vmatprep.subr.mxu0 0.0
    %269 = vmatpush2.msra.mxu0 0.0
    %270 = vmatprep.subr.mxu0 0.0
    %271 = vmatpush2.msra.mxu0 0.0
    %272 = vmatprep.subr.mxu0 0.0
    %273 = vmatpush2.msra.mxu0 0.0
    %274 = vmatprep.subr.mxu0 0.0
    %275 = vmatpush2.msra.mxu0 0.0
    %276 = vmatprep.subr.mxu0 0.0
    %277 = vmatpush2.msra.mxu0 0.0
    %278 = vmatprep.subr.mxu0 0.0
    %279 = vmatpush2.msra.mxu0 0.0
    %280 = vmatprep.subr.mxu0 0.0
    %281 = vmatpush2.msra.mxu0 0.0
    %282 = vmatprep.subr.mxu0 0.0
    %283 = vmatpush2.msra.mxu0 0.0
    %284 = vmatprep.subr.mxu0 0.0
    %285 = vmatpush2.msra.mxu0 0.0
    %286 = vmatprep.subr.mxu0 0.0
    %287 = vmatpush2.msra.mxu0 0.0
    %288 = vmatprep.subr.mxu0 0.0
    %289 = vmatpush2.msra.mxu0 0.0
    %290 = vmatprep.subr.mxu0 0.0
    %291 = vmatpush2.msra.mxu0 0.0
    %292 = vmatprep.subr.mxu0 0.0
    %293 = vmatpush2.msra.mxu0 0.0
    %294 = vmatprep.subr.mxu0 0.0
    %295 = vmatpush2.msra.mxu0 0.0
    %296 = vmatprep.subr.mxu0 0.0
    %297 = vmatpush2.msra.mxu0 0.0
    %298 = vmatprep.subr.mxu0 0.0
    %299 = vmatpush2.msra.mxu0 0.0
    %300 = vmatprep.mubr.f32.mxu0 0.0
    %v301 = vand.u32 %v119, 4294901760
    %302 = vmatmul.mubr.f32.gmra.mxu0 %v301
    %v303 = vpop.f32.mrf.mxu0
    %v304 = vadd.f32 %v203, %v303
    %v305 = vpop.f32.mrf.mxu0
    %306 = vdwg.mxu0
    %307 = vmatprep.subr.mxu0 0.0
    %308 = vmatpush1.msra.mxu0 0.0
    %309 = vmatprep.subr.mxu0 0.0
    %310 = vmatpush1.msra.mxu0 0.0
    %311 = vmatprep.subr.mxu0 0.0
    %312 = vmatpush1.msra.mxu0 0.0
    %313 = vmatprep.subr.mxu0 0.0
    %314 = vmatpush1.msra.mxu0 0.0
    %315 = vmatprep.subr.mxu0 0.0
    %316 = vmatpush1.msra.mxu0 0.0
    %317 = vmatprep.subr.mxu0 0.0
    %318 = vmatpush1.msra.mxu0 0.0
    %319 = vmatprep.subr.mxu0 0.0
    %320 = vmatpush1.msra.mxu0 0.0
    %321 = vmatprep.subr.mxu0 0.0
    %322 = vmatpush1.msra.mxu0 0.0
    %323 = vmatprep.subr.mxu0 0.0
    %324 = vmatpush1.msra.mxu0 0.0
    %325 = vmatprep.subr.mxu0 0.0
    %326 = vmatpush1.msra.mxu0 0.0
    %327 = vmatprep.subr.mxu0 0.0
    %v328 = vand.u32 %v123, 4294901760
    %v329 = vsub.f32 %v123, %v328
    %330 = vmatpush1.msra.mxu0 %v329
    %331 = vmatprep.subr.mxu0 0.0
    %v332 = vand.u32 %v115, 4294901760
    %v333 = vsub.f32 %v115, %v332
    %334 = vmatpush1.msra.mxu0 %v333
    %335 = vmatprep.subr.mxu0 0.0
    %v336 = vand.u32 %v114, 4294901760
    %v337 = vsub.f32 %v114, %v336
    %338 = vmatpush1.msra.mxu0 %v337
    %339 = vmatprep.subr.mxu0 0.0
    %v340 = vand.u32 %v113, 4294901760
    %v341 = vsub.f32 %v113, %v340
    %342 = vmatpush1.msra.mxu0 %v341
    %343 = vmatprep.subr.mxu0 0.0
    %v344 = vand.u32 %v112, 4294901760
    %v345 = vsub.f32 %v112, %v344
    %346 = vmatpush1.msra.mxu0 %v345
    %347 = vmatprep.subr.mxu0 0.0
    %v348 = vand.u32 %v111, 4294901760
    %v349 = vsub.f32 %v111, %v348
    %350 = vmatpush1.msra.mxu0 %v349
    %351 = vmatprep.subr.mxu0 0.0
    %352 = vmatpush2.msra.mxu0 0.0
    %353 = vmatprep.subr.mxu0 0.0
    %354 = vmatpush2.msra.mxu0 0.0
    %355 = vmatprep.subr.mxu0 0.0
    %356 = vmatpush2.msra.mxu0 0.0
    %357 = vmatprep.subr.mxu0 0.0
    %358 = vmatpush2.msra.mxu0 0.0
    %359 = vmatprep.subr.mxu0 0.0
    %360 = vmatpush2.msra.mxu0 0.0
    %361 = vmatprep.subr.mxu0 0.0
    %362 = vmatpush2.msra.mxu0 0.0
    %363 = vmatprep.subr.mxu0 0.0
    %364 = vmatpush2.msra.mxu0 0.0
    %365 = vmatprep.subr.mxu0 0.0
    %366 = vmatpush2.msra.mxu0 0.0
    %367 = vmatprep.subr.mxu0 0.0
    %368 = vmatpush2.msra.mxu0 0.0
    %369 = vmatprep.subr.mxu0 0.0
    %370 = vmatpush2.msra.mxu0 0.0
    %371 = vmatprep.subr.mxu0 0.0
    %372 = vmatpush2.msra.mxu0 0.0
    %373 = vmatprep.subr.mxu0 0.0
    %374 = vmatpush2.msra.mxu0 0.0
    %375 = vmatprep.subr.mxu0 0.0
    %376 = vmatpush2.msra.mxu0 0.0
    %377 = vmatprep.subr.mxu0 0.0
    %378 = vmatpush2.msra.mxu0 0.0
    %379 = vmatprep.subr.mxu0 0.0
    %380 = vmatpush2.msra.mxu0 0.0
    %381 = vmatprep.subr.mxu0 0.0
    %382 = vmatpush2.msra.mxu0 0.0
    %383 = vmatprep.mubr.f32.mxu0 0.0
    %v384 = vand.u32 %v119, 4294901760
    %v385 = vsub.f32 %v119, %v384
    %386 = vmatmul.mubr.f32.gmra.mxu0 %v385
    %v387 = vpop.f32.mrf.mxu0
    %v388 = vadd.f32 %v304, %v387
    %v389 = vpop.f32.mrf.mxu0
    %390 = vdwg.mxu0
    %391 = vmatprep.subr.mxu0 0.0
    %392 = vmatpush1.msra.mxu0 0.0
    %393 = vmatprep.subr.mxu0 0.0
    %394 = vmatpush1.msra.mxu0 0.0
    %395 = vmatprep.subr.mxu0 0.0
    %396 = vmatpush1.msra.mxu0 0.0
    %397 = vmatprep.subr.mxu0 0.0
    %398 = vmatpush1.msra.mxu0 0.0
    %399 = vmatprep.subr.mxu0 0.0
    %400 = vmatpush1.msra.mxu0 0.0
    %401 = vmatprep.subr.mxu0 0.0
    %402 = vmatpush1.msra.mxu0 0.0
    %403 = vmatprep.subr.mxu0 0.0
    %404 = vmatpush1.msra.mxu0 0.0
    %405 = vmatprep.subr.mxu0 0.0
    %406 = vmatpush1.msra.mxu0 0.0
    %407 = vmatprep.subr.mxu0 0.0
    %408 = vmatpush1.msra.mxu0 0.0
    %409 = vmatprep.subr.mxu0 0.0
    %410 = vmatpush1.msra.mxu0 0.0
    %411 = vmatprep.subr.mxu0 0.0
    %v412 = vand.u32 %v123, 4294901760
    %413 = vmatpush1.msra.mxu0 %v412
    %414 = vmatprep.subr.mxu0 0.0
    %v415 = vand.u32 %v115, 4294901760
    %416 = vmatpush1.msra.mxu0 %v415
    %417 = vmatprep.subr.mxu0 0.0
    %v418 = vand.u32 %v114, 4294901760
    %419 = vmatpush1.msra.mxu0 %v418
    %420 = vmatprep.subr.mxu0 0.0
    %v421 = vand.u32 %v113, 4294901760
    %422 = vmatpush1.msra.mxu0 %v421
    %423 = vmatprep.subr.mxu0 0.0
    %v424 = vand.u32 %v112, 4294901760
    %425 = vmatpush1.msra.mxu0 %v424
    %426 = vmatprep.subr.mxu0 0.0
    %v427 = vand.u32 %v111, 4294901760
    %428 = vmatpush1.msra.mxu0 %v427
    %429 = vmatprep.subr.mxu0 0.0
    %430 = vmatpush2.msra.mxu0 0.0
    %431 = vmatprep.subr.mxu0 0.0
    %432 = vmatpush2.msra.mxu0 0.0
    %433 = vmatprep.subr.mxu0 0.0
    %434 = vmatpush2.msra.mxu0 0.0
    %435 = vmatprep.subr.mxu0 0.0
    %436 = vmatpush2.msra.mxu0 0.0
    %437 = vmatprep.subr.mxu0 0.0
    %438 = vmatpush2.msra.mxu0 0.0
    %439 = vmatprep.subr.mxu0 0.0
    %440 = vmatpush2.msra.mxu0 0.0
    %441 = vmatprep.subr.mxu0 0.0
    %442 = vmatpush2.msra.mxu0 0.0
    %443 = vmatprep.subr.mxu0 0.0
    %444 = vmatpush2.msra.mxu0 0.0
    %445 = vmatprep.subr.mxu0 0.0
    %446 = vmatpush2.msra.mxu0 0.0
    %447 = vmatprep.subr.mxu0 0.0
    %448 = vmatpush2.msra.mxu0 0.0
    %449 = vmatprep.subr.mxu0 0.0
    %450 = vmatpush2.msra.mxu0 0.0
    %451 = vmatprep.subr.mxu0 0.0
    %452 = vmatpush2.msra.mxu0 0.0
    %453 = vmatprep.subr.mxu0 0.0
    %454 = vmatpush2.msra.mxu0 0.0
    %455 = vmatprep.subr.mxu0 0.0
    %456 = vmatpush2.msra.mxu0 0.0
    %457 = vmatprep.subr.mxu0 0.0
    %458 = vmatpush2.msra.mxu0 0.0
    %459 = vmatprep.subr.mxu0 0.0
    %460 = vmatpush2.msra.mxu0 0.0
    %461 = vmatprep.mubr.f32.mxu0 0.0
    %v462 = vand.u32 %v119, 4294901760
    %v463 = vsub.f32 %v119, %v462
    %v464 = vand.u32 %v463, 4294901760
    %465 = vmatmul.mubr.f32.gmra.mxu0 %v464
    %v466 = vpop.f32.mrf.mxu0
    %v467 = vadd.f32 %v388, %v466
    %v468 = vpop.f32.mrf.mxu0
    %469 = vdwg.mxu0
    %470 = vmatprep.subr.mxu0 0.0
    %471 = vmatpush1.msra.mxu0 0.0
    %472 = vmatprep.subr.mxu0 0.0
    %473 = vmatpush1.msra.mxu0 0.0
    %474 = vmatprep.subr.mxu0 0.0
    %475 = vmatpush1.msra.mxu0 0.0
    %476 = vmatprep.subr.mxu0 0.0
    %477 = vmatpush1.msra.mxu0 0.0
    %478 = vmatprep.subr.mxu0 0.0
    %479 = vmatpush1.msra.mxu0 0.0
    %480 = vmatprep.subr.mxu0 0.0
    %481 = vmatpush1.msra.mxu0 0.0
    %482 = vmatprep.subr.mxu0 0.0
    %483 = vmatpush1.msra.mxu0 0.0
    %484 = vmatprep.subr.mxu0 0.0
    %485 = vmatpush1.msra.mxu0 0.0
    %486 = vmatprep.subr.mxu0 0.0
    %487 = vmatpush1.msra.mxu0 0.0
    %488 = vmatprep.subr.mxu0 0.0
    %489 = vmatpush1.msra.mxu0 0.0
    %490 = vmatprep.subr.mxu0 0.0
    %v491 = vand.u32 %v123, 4294901760
    %v492 = vsub.f32 %v123, %v491
    %v493 = vand.u32 %v492, 4294901760
    %494 = vmatpush1.msra.mxu0 %v493
    %495 = vmatprep.subr.mxu0 0.0
    %v496 = vand.u32 %v115, 4294901760
    %v497 = vsub.f32 %v115, %v496
    %v498 = vand.u32 %v497, 4294901760
    %499 = vmatpush1.msra.mxu0 %v498
    %500 = vmatprep.subr.mxu0 0.0
    %v501 = vand.u32 %v114, 4294901760
    %v502 = vsub.f32 %v114, %v501
    %v503 = vand.u32 %v502, 4294901760
    %504 = vmatpush1.msra.mxu0 %v503
    %505 = vmatprep.subr.mxu0 0.0
    %v506 = vand.u32 %v113, 4294901760
    %v507 = vsub.f32 %v113, %v506
    %v508 = vand.u32 %v507, 4294901760
    %509 = vmatpush1.msra.mxu0 %v508
    %510 = vmatprep.subr.mxu0 0.0
    %v511 = vand.u32 %v112, 4294901760
    %v512 = vsub.f32 %v112, %v511
    %v513 = vand.u32 %v512, 4294901760
    %514 = vmatpush1.msra.mxu0 %v513
    %515 = vmatprep.subr.mxu0 0.0
    %v516 = vand.u32 %v111, 4294901760
    %v517 = vsub.f32 %v111, %v516
    %v518 = vand.u32 %v517, 4294901760
    %519 = vmatpush1.msra.mxu0 %v518
    %520 = vmatprep.subr.mxu0 0.0
    %521 = vmatpush2.msra.mxu0 0.0
    %522 = vmatprep.subr.mxu0 0.0
    %523 = vmatpush2.msra.mxu0 0.0
    %524 = vmatprep.subr.mxu0 0.0
    %525 = vmatpush2.msra.mxu0 0.0
    %526 = vmatprep.subr.mxu0 0.0
    %527 = vmatpush2.msra.mxu0 0.0
    %528 = vmatprep.subr.mxu0 0.0
    %529 = vmatpush2.msra.mxu0 0.0
    %530 = vmatprep.subr.mxu0 0.0
    %531 = vmatpush2.msra.mxu0 0.0
    %532 = vmatprep.subr.mxu0 0.0
    %533 = vmatpush2.msra.mxu0 0.0
    %534 = vmatprep.subr.mxu0 0.0
    %535 = vmatpush2.msra.mxu0 0.0
    %536 = vmatprep.subr.mxu0 0.0
    %537 = vmatpush2.msra.mxu0 0.0
    %538 = vmatprep.subr.mxu0 0.0
    %539 = vmatpush2.msra.mxu0 0.0
    %540 = vmatprep.subr.mxu0 0.0
    %541 = vmatpush2.msra.mxu0 0.0
    %542 = vmatprep.subr.mxu0 0.0
    %543 = vmatpush2.msra.mxu0 0.0
    %544 = vmatprep.subr.mxu0 0.0
    %545 = vmatpush2.msra.mxu0 0.0
    %546 = vmatprep.subr.mxu0 0.0
    %547 = vmatpush2.msra.mxu0 0.0
    %548 = vmatprep.subr.mxu0 0.0
    %549 = vmatpush2.msra.mxu0 0.0
    %550 = vmatprep.subr.mxu0 0.0
    %551 = vmatpush2.msra.mxu0 0.0
    %552 = vmatprep.mubr.f32.mxu0 0.0
    %v553 = vand.u32 %v119, 4294901760
    %554 = vmatmul.mubr.f32.gmra.mxu0 %v553
    %v555 = vpop.f32.mrf.mxu0
    %v556 = vadd.f32 %v467, %v555
    %v557 = vpop.f32.mrf.mxu0
    %558 = vdwg.mxu0
    %559 = vmatprep.subr.mxu0 0.0
    %560 = vmatpush1.msra.mxu0 0.0
    %561 = vmatprep.subr.mxu0 0.0
    %562 = vmatpush1.msra.mxu0 0.0
    %563 = vmatprep.subr.mxu0 0.0
    %564 = vmatpush1.msra.mxu0 0.0
    %565 = vmatprep.subr.mxu0 0.0
    %566 = vmatpush1.msra.mxu0 0.0
    %567 = vmatprep.subr.mxu0 0.0
    %568 = vmatpush1.msra.mxu0 0.0
    %569 = vmatprep.subr.mxu0 0.0
    %570 = vmatpush1.msra.mxu0 0.0
    %571 = vmatprep.subr.mxu0 0.0
    %572 = vmatpush1.msra.mxu0 0.0
    %573 = vmatprep.subr.mxu0 0.0
    %574 = vmatpush1.msra.mxu0 0.0
    %575 = vmatprep.subr.mxu0 0.0
    %576 = vmatpush1.msra.mxu0 0.0
    %577 = vmatprep.subr.mxu0 0.0
    %578 = vmatpush1.msra.mxu0 0.0
    %579 = vmatprep.subr.mxu0 0.0
    %v580 = vand.u32 %v123, 4294901760
    %581 = vmatpush1.msra.mxu0 %v580
    %582 = vmatprep.subr.mxu0 0.0
    %v583 = vand.u32 %v115, 4294901760
    %584 = vmatpush1.msra.mxu0 %v583
    %585 = vmatprep.subr.mxu0 0.0
    %v586 = vand.u32 %v114, 4294901760
    %587 = vmatpush1.msra.mxu0 %v586
    %588 = vmatprep.subr.mxu0 0.0
    %v589 = vand.u32 %v113, 4294901760
    %590 = vmatpush1.msra.mxu0 %v589
    %591 = vmatprep.subr.mxu0 0.0
    %v592 = vand.u32 %v112, 4294901760
    %593 = vmatpush1.msra.mxu0 %v592
    %594 = vmatprep.subr.mxu0 0.0
    %v595 = vand.u32 %v111, 4294901760
    %596 = vmatpush1.msra.mxu0 %v595
    %597 = vmatprep.subr.mxu0 0.0
    %598 = vmatpush2.msra.mxu0 0.0
    %599 = vmatprep.subr.mxu0 0.0
    %600 = vmatpush2.msra.mxu0 0.0
    %601 = vmatprep.subr.mxu0 0.0
    %602 = vmatpush2.msra.mxu0 0.0
    %603 = vmatprep.subr.mxu0 0.0
    %604 = vmatpush2.msra.mxu0 0.0
    %605 = vmatprep.subr.mxu0 0.0
    %606 = vmatpush2.msra.mxu0 0.0
    %607 = vmatprep.subr.mxu0 0.0
    %608 = vmatpush2.msra.mxu0 0.0
    %609 = vmatprep.subr.mxu0 0.0
    %610 = vmatpush2.msra.mxu0 0.0
    %611 = vmatprep.subr.mxu0 0.0
    %612 = vmatpush2.msra.mxu0 0.0
    %613 = vmatprep.subr.mxu0 0.0
    %614 = vmatpush2.msra.mxu0 0.0
    %615 = vmatprep.subr.mxu0 0.0
    %616 = vmatpush2.msra.mxu0 0.0
    %617 = vmatprep.subr.mxu0 0.0
    %618 = vmatpush2.msra.mxu0 0.0
    %619 = vmatprep.subr.mxu0 0.0
    %620 = vmatpush2.msra.mxu0 0.0
    %621 = vmatprep.subr.mxu0 0.0
    %622 = vmatpush2.msra.mxu0 0.0
    %623 = vmatprep.subr.mxu0 0.0
    %624 = vmatpush2.msra.mxu0 0.0
    %625 = vmatprep.subr.mxu0 0.0
    %626 = vmatpush2.msra.mxu0 0.0
    %627 = vmatprep.subr.mxu0 0.0
    %628 = vmatpush2.msra.mxu0 0.0
    %629 = vmatprep.mubr.f32.mxu0 0.0
    %v630 = vand.u32 %v119, 4294901760
    %631 = vmatmul.mubr.f32.gmra.mxu0 %v630
    %v632 = vpop.f32.mrf.mxu0
    %v633 = vadd.f32 %v556, %v632
    %v634 = vpop.f32.mrf.mxu0
    %635 = vdwg.mxu0
    %637 = vrot.lane.b32.xlu0 %v633, 124
    %v638 = vpop.permute.xlu0 %637
    %v640 = vmul.f32 %v633, %v638
    %vm641 = vcmask 64512
    %v642 = vsel %vm641, %v633, %v640
    %v643 = vld [vmem:[#allocation8] sm:$0xff]
    %v644 = vld [vmem:[#allocation8 + $0x8] sm:$0xf]
    %vm645 = vcmask 97280
    %v647 = vsel %vm645, %v642, 0
    %v650 = vsel %vm121, %v644, 0
    %652 = vmatprep.subr.mxu0 0.0
    %653 = vmatpush1.msra.mxu0 0.0
    %654 = vmatprep.subr.mxu0 0.0
    %655 = vmatpush1.msra.mxu0 0.0
    %656 = vmatprep.subr.mxu0 0.0
    %657 = vmatpush1.msra.mxu0 0.0
    %658 = vmatprep.subr.mxu0 0.0
    %659 = vmatpush1.msra.mxu0 0.0
    %660 = vmatprep.subr.mxu0 0.0
    %661 = vmatpush1.msra.mxu0 0.0
    %662 = vmatprep.subr.mxu0 0.0
    %663 = vmatpush1.msra.mxu0 0.0
    %664 = vmatprep.subr.mxu0 0.0
    %665 = vmatpush1.msra.mxu0 0.0
    %666 = vmatprep.subr.mxu0 0.0
    %667 = vmatpush1.msra.mxu0 0.0
    %668 = vmatprep.subr.mxu0 0.0
    %669 = vmatpush1.msra.mxu0 0.0
    %670 = vmatprep.subr.mxu0 0.0
    %671 = vmatpush1.msra.mxu0 0.0
    %672 = vmatprep.subr.mxu0 0.0
    %673 = vmatpush1.msra.mxu0 0.0
    %674 = vmatprep.subr.mxu0 0.0
    %675 = vmatpush1.msra.mxu0 0.0
    %676 = vmatprep.subr.mxu0 0.0
    %677 = vmatpush1.msra.mxu0 0.0
    %678 = vmatprep.subr.mxu0 0.0
    %679 = vmatpush1.msra.mxu0 0.0
    %680 = vmatprep.subr.mxu0 0.0
    %v681 = vand.u32 %v650, 4294901760
    %682 = vmatpush1.msra.mxu0 %v681
    %683 = vmatprep.subr.mxu0 0.0
    %v684 = vand.u32 %v643, 4294901760
    %685 = vmatpush1.msra.mxu0 %v684
    %686 = vmatprep.subr.mxu0 0.0
    %687 = vmatpush2.msra.mxu0 0.0
    %688 = vmatprep.subr.mxu0 0.0
    %689 = vmatpush2.msra.mxu0 0.0
    %690 = vmatprep.subr.mxu0 0.0
    %691 = vmatpush2.msra.mxu0 0.0
    %692 = vmatprep.subr.mxu0 0.0
    %693 = vmatpush2.msra.mxu0 0.0
    %694 = vmatprep.subr.mxu0 0.0
    %695 = vmatpush2.msra.mxu0 0.0
    %696 = vmatprep.subr.mxu0 0.0
    %697 = vmatpush2.msra.mxu0 0.0
    %698 = vmatprep.subr.mxu0 0.0
    %699 = vmatpush2.msra.mxu0 0.0
    %700 = vmatprep.subr.mxu0 0.0
    %701 = vmatpush2.msra.mxu0 0.0
    %702 = vmatprep.subr.mxu0 0.0
    %703 = vmatpush2.msra.mxu0 0.0
    %704 = vmatprep.subr.mxu0 0.0
    %705 = vmatpush2.msra.mxu0 0.0
    %706 = vmatprep.subr.mxu0 0.0
    %707 = vmatpush2.msra.mxu0 0.0
    %708 = vmatprep.subr.mxu0 0.0
    %709 = vmatpush2.msra.mxu0 0.0
    %710 = vmatprep.subr.mxu0 0.0
    %711 = vmatpush2.msra.mxu0 0.0
    %712 = vmatprep.subr.mxu0 0.0
    %713 = vmatpush2.msra.mxu0 0.0
    %714 = vmatprep.subr.mxu0 0.0
    %715 = vmatpush2.msra.mxu0 0.0
    %716 = vmatprep.subr.mxu0 0.0
    %717 = vmatpush2.msra.mxu0 0.0
    %718 = vmatprep.mubr.f32.mxu0 0.0
    %v719 = vand.u32 %v647, 4294901760
    %v720 = vsub.f32 %v647, %v719
    %v721 = vand.u32 %v720, 4294901760
    %v722 = vsub.f32 %v720, %v721
    %v723 = vand.u32 %v722, 4294901760
    %724 = vmatmul.mubr.f32.gmra.mxu0 %v723
    %v725 = vpop.f32.mrf.mxu0
    %v726 = vadd.f32 0.0, %v725
    %v727 = vpop.f32.mrf.mxu0
    %728 = vdwg.mxu0
    %729 = vmatprep.subr.mxu0 0.0
    %730 = vmatpush1.msra.mxu0 0.0
    %731 = vmatprep.subr.mxu0 0.0
    %732 = vmatpush1.msra.mxu0 0.0
    %733 = vmatprep.subr.mxu0 0.0
    %734 = vmatpush1.msra.mxu0 0.0
    %735 = vmatprep.subr.mxu0 0.0
    %736 = vmatpush1.msra.mxu0 0.0
    %737 = vmatprep.subr.mxu0 0.0
    %738 = vmatpush1.msra.mxu0 0.0
    %739 = vmatprep.subr.mxu0 0.0
    %740 = vmatpush1.msra.mxu0 0.0
    %741 = vmatprep.subr.mxu0 0.0
    %742 = vmatpush1.msra.mxu0 0.0
    %743 = vmatprep.subr.mxu0 0.0
    %744 = vmatpush1.msra.mxu0 0.0
    %745 = vmatprep.subr.mxu0 0.0
    %746 = vmatpush1.msra.mxu0 0.0
    %747 = vmatprep.subr.mxu0 0.0
    %748 = vmatpush1.msra.mxu0 0.0
    %749 = vmatprep.subr.mxu0 0.0
    %750 = vmatpush1.msra.mxu0 0.0
    %751 = vmatprep.subr.mxu0 0.0
    %752 = vmatpush1.msra.mxu0 0.0
    %753 = vmatprep.subr.mxu0 0.0
    %754 = vmatpush1.msra.mxu0 0.0
    %755 = vmatprep.subr.mxu0 0.0
    %756 = vmatpush1.msra.mxu0 0.0
    %757 = vmatprep.subr.mxu0 0.0
    %v758 = vand.u32 %v650, 4294901760
    %v759 = vsub.f32 %v650, %v758
    %v760 = vand.u32 %v759, 4294901760
    %v761 = vsub.f32 %v759, %v760
    %v762 = vand.u32 %v761, 4294901760
    %763 = vmatpush1.msra.mxu0 %v762
    %764 = vmatprep.subr.mxu0 0.0
    %v765 = vand.u32 %v643, 4294901760
    %v766 = vsub.f32 %v643, %v765
    %v767 = vand.u32 %v766, 4294901760
    %v768 = vsub.f32 %v766, %v767
    %v769 = vand.u32 %v768, 4294901760
    %770 = vmatpush1.msra.mxu0 %v769
    %771 = vmatprep.subr.mxu0 0.0
    %772 = vmatpush2.msra.mxu0 0.0
    %773 = vmatprep.subr.mxu0 0.0
    %774 = vmatpush2.msra.mxu0 0.0
    %775 = vmatprep.subr.mxu0 0.0
    %776 = vmatpush2.msra.mxu0 0.0
    %777 = vmatprep.subr.mxu0 0.0
    %778 = vmatpush2.msra.mxu0 0.0
    %779 = vmatprep.subr.mxu0 0.0
    %780 = vmatpush2.msra.mxu0 0.0
    %781 = vmatprep.subr.mxu0 0.0
    %782 = vmatpush2.msra.mxu0 0.0
    %783 = vmatprep.subr.mxu0 0.0
    %784 = vmatpush2.msra.mxu0 0.0
    %785 = vmatprep.subr.mxu0 0.0
    %786 = vmatpush2.msra.mxu0 0.0
    %787 = vmatprep.subr.mxu0 0.0
    %788 = vmatpush2.msra.mxu0 0.0
    %789 = vmatprep.subr.mxu0 0.0
    %790 = vmatpush2.msra.mxu0 0.0
    %791 = vmatprep.subr.mxu0 0.0
    %792 = vmatpush2.msra.mxu0 0.0
    %793 = vmatprep.subr.mxu0 0.0
    %794 = vmatpush2.msra.mxu0 0.0
    %795 = vmatprep.subr.mxu0 0.0
    %796 = vmatpush2.msra.mxu0 0.0
    %797 = vmatprep.subr.mxu0 0.0
    %798 = vmatpush2.msra.mxu0 0.0
    %799 = vmatprep.subr.mxu0 0.0
    %800 = vmatpush2.msra.mxu0 0.0
    %801 = vmatprep.subr.mxu0 0.0
    %802 = vmatpush2.msra.mxu0 0.0
    %803 = vmatprep.mubr.f32.mxu0 0.0
    %v804 = vand.u32 %v647, 4294901760
    %805 = vmatmul.mubr.f32.gmra.mxu0 %v804
    %v806 = vpop.f32.mrf.mxu0
    %v807 = vadd.f32 %v726, %v806
    %v808 = vpop.f32.mrf.mxu0
    %809 = vdwg.mxu0
    %810 = vmatprep.subr.mxu0 0.0
    %811 = vmatpush1.msra.mxu0 0.0
    %812 = vmatprep.subr.mxu0 0.0
    %813 = vmatpush1.msra.mxu0 0.0
    %814 = vmatprep.subr.mxu0 0.0
    %815 = vmatpush1.msra.mxu0 0.0
    %816 = vmatprep.subr.mxu0 0.0
    %817 = vmatpush1.msra.mxu0 0.0
    %818 = vmatprep.subr.mxu0 0.0
    %819 = vmatpush1.msra.mxu0 0.0
    %820 = vmatprep.subr.mxu0 0.0
    %821 = vmatpush1.msra.mxu0 0.0
    %822 = vmatprep.subr.mxu0 0.0
    %823 = vmatpush1.msra.mxu0 0.0
    %824 = vmatprep.subr.mxu0 0.0
    %825 = vmatpush1.msra.mxu0 0.0
    %826 = vmatprep.subr.mxu0 0.0
    %827 = vmatpush1.msra.mxu0 0.0
    %828 = vmatprep.subr.mxu0 0.0
    %829 = vmatpush1.msra.mxu0 0.0
    %830 = vmatprep.subr.mxu0 0.0
    %831 = vmatpush1.msra.mxu0 0.0
    %832 = vmatprep.subr.mxu0 0.0
    %833 = vmatpush1.msra.mxu0 0.0
    %834 = vmatprep.subr.mxu0 0.0
    %835 = vmatpush1.msra.mxu0 0.0
    %836 = vmatprep.subr.mxu0 0.0
    %837 = vmatpush1.msra.mxu0 0.0
    %838 = vmatprep.subr.mxu0 0.0
    %v839 = vand.u32 %v650, 4294901760
    %v840 = vsub.f32 %v650, %v839
    %841 = vmatpush1.msra.mxu0 %v840
    %842 = vmatprep.subr.mxu0 0.0
    %v843 = vand.u32 %v643, 4294901760
    %v844 = vsub.f32 %v643, %v843
    %845 = vmatpush1.msra.mxu0 %v844
    %846 = vmatprep.subr.mxu0 0.0
    %847 = vmatpush2.msra.mxu0 0.0
    %848 = vmatprep.subr.mxu0 0.0
    %849 = vmatpush2.msra.mxu0 0.0
    %850 = vmatprep.subr.mxu0 0.0
    %851 = vmatpush2.msra.mxu0 0.0
    %852 = vmatprep.subr.mxu0 0.0
    %853 = vmatpush2.msra.mxu0 0.0
    %854 = vmatprep.subr.mxu0 0.0
    %855 = vmatpush2.msra.mxu0 0.0
    %856 = vmatprep.subr.mxu0 0.0
    %857 = vmatpush2.msra.mxu0 0.0
    %858 = vmatprep.subr.mxu0 0.0
    %859 = vmatpush2.msra.mxu0 0.0
    %860 = vmatprep.subr.mxu0 0.0
    %861 = vmatpush2.msra.mxu0 0.0
    %862 = vmatprep.subr.mxu0 0.0
    %863 = vmatpush2.msra.mxu0 0.0
    %864 = vmatprep.subr.mxu0 0.0
    %865 = vmatpush2.msra.mxu0 0.0
    %866 = vmatprep.subr.mxu0 0.0
    %867 = vmatpush2.msra.mxu0 0.0
    %868 = vmatprep.subr.mxu0 0.0
    %869 = vmatpush2.msra.mxu0 0.0
    %870 = vmatprep.subr.mxu0 0.0
    %871 = vmatpush2.msra.mxu0 0.0
    %872 = vmatprep.subr.mxu0 0.0
    %873 = vmatpush2.msra.mxu0 0.0
    %874 = vmatprep.subr.mxu0 0.0
    %875 = vmatpush2.msra.mxu0 0.0
    %876 = vmatprep.subr.mxu0 0.0
    %877 = vmatpush2.msra.mxu0 0.0
    %878 = vmatprep.mubr.f32.mxu0 0.0
    %v879 = vand.u32 %v647, 4294901760
    %v880 = vsub.f32 %v647, %v879
    %881 = vmatmul.mubr.f32.gmra.mxu0 %v880
    %v882 = vpop.f32.mrf.mxu0
    %v883 = vadd.f32 %v807, %v882
    %v884 = vpop.f32.mrf.mxu0
    %885 = vdwg.mxu0
    %886 = vmatprep.subr.mxu0 0.0
    %887 = vmatpush1.msra.mxu0 0.0
    %888 = vmatprep.subr.mxu0 0.0
    %889 = vmatpush1.msra.mxu0 0.0
    %890 = vmatprep.subr.mxu0 0.0
    %891 = vmatpush1.msra.mxu0 0.0
    %892 = vmatprep.subr.mxu0 0.0
    %893 = vmatpush1.msra.mxu0 0.0
    %894 = vmatprep.subr.mxu0 0.0
    %895 = vmatpush1.msra.mxu0 0.0
    %896 = vmatprep.subr.mxu0 0.0
    %897 = vmatpush1.msra.mxu0 0.0
    %898 = vmatprep.subr.mxu0 0.0
    %899 = vmatpush1.msra.mxu0 0.0
    %900 = vmatprep.subr.mxu0 0.0
    %901 = vmatpush1.msra.mxu0 0.0
    %902 = vmatprep.subr.mxu0 0.0
    %903 = vmatpush1.msra.mxu0 0.0
    %904 = vmatprep.subr.mxu0 0.0
    %905 = vmatpush1.msra.mxu0 0.0
    %906 = vmatprep.subr.mxu0 0.0
    %907 = vmatpush1.msra.mxu0 0.0
    %908 = vmatprep.subr.mxu0 0.0
    %909 = vmatpush1.msra.mxu0 0.0
    %910 = vmatprep.subr.mxu0 0.0
    %911 = vmatpush1.msra.mxu0 0.0
    %912 = vmatprep.subr.mxu0 0.0
    %913 = vmatpush1.msra.mxu0 0.0
    %914 = vmatprep.subr.mxu0 0.0
    %v915 = vand.u32 %v650, 4294901760
    %916 = vmatpush1.msra.mxu0 %v915
    %917 = vmatprep.subr.mxu0 0.0
    %v918 = vand.u32 %v643, 4294901760
    %919 = vmatpush1.msra.mxu0 %v918
    %920 = vmatprep.subr.mxu0 0.0
    %921 = vmatpush2.msra.mxu0 0.0
    %922 = vmatprep.subr.mxu0 0.0
    %923 = vmatpush2.msra.mxu0 0.0
    %924 = vmatprep.subr.mxu0 0.0
    %925 = vmatpush2.msra.mxu0 0.0
    %926 = vmatprep.subr.mxu0 0.0
    %927 = vmatpush2.msra.mxu0 0.0
    %928 = vmatprep.subr.mxu0 0.0
    %929 = vmatpush2.msra.mxu0 0.0
    %930 = vmatprep.subr.mxu0 0.0
    %931 = vmatpush2.msra.mxu0 0.0
    %932 = vmatprep.subr.mxu0 0.0
    %933 = vmatpush2.msra.mxu0 0.0
    %934 = vmatprep.subr.mxu0 0.0
    %935 = vmatpush2.msra.mxu0 0.0
    %936 = vmatprep.subr.mxu0 0.0
    %937 = vmatpush2.msra.mxu0 0.0
    %938 = vmatprep.subr.mxu0 0.0
    %939 = vmatpush2.msra.mxu0 0.0
    %940 = vmatprep.subr.mxu0 0.0
    %941 = vmatpush2.msra.mxu0 0.0
    %942 = vmatprep.subr.mxu0 0.0
    %943 = vmatpush2.msra.mxu0 0.0
    %944 = vmatprep.subr.mxu0 0.0
    %945 = vmatpush2.msra.mxu0 0.0
    %946 = vmatprep.subr.mxu0 0.0
    %947 = vmatpush2.msra.mxu0 0.0
    %948 = vmatprep.subr.mxu0 0.0
    %949 = vmatpush2.msra.mxu0 0.0
    %950 = vmatprep.subr.mxu0 0.0
    %951 = vmatpush2.msra.mxu0 0.0
    %952 = vmatprep.mubr.f32.mxu0 0.0
    %v953 = vand.u32 %v647, 4294901760
    %v954 = vsub.f32 %v647, %v953
    %v955 = vand.u32 %v954, 4294901760
    %956 = vmatmul.mubr.f32.gmra.mxu0 %v955
    %v957 = vpop.f32.mrf.mxu0
    %v958 = vadd.f32 %v883, %v957
    %v959 = vpop.f32.mrf.mxu0
    %960 = vdwg.mxu0
    %961 = vmatprep.subr.mxu0 0.0
    %962 = vmatpush1.msra.mxu0 0.0
    %963 = vmatprep.subr.mxu0 0.0
    %964 = vmatpush1.msra.mxu0 0.0
    %965 = vmatprep.subr.mxu0 0.0
    %966 = vmatpush1.msra.mxu0 0.0
    %967 = vmatprep.subr.mxu0 0.0
    %968 = vmatpush1.msra.mxu0 0.0
    %969 = vmatprep.subr.mxu0 0.0
    %970 = vmatpush1.msra.mxu0 0.0
    %971 = vmatprep.subr.mxu0 0.0
    %972 = vmatpush1.msra.mxu0 0.0
    %973 = vmatprep.subr.mxu0 0.0
    %974 = vmatpush1.msra.mxu0 0.0
    %975 = vmatprep.subr.mxu0 0.0
    %976 = vmatpush1.msra.mxu0 0.0
    %977 = vmatprep.subr.mxu0 0.0
    %978 = vmatpush1.msra.mxu0 0.0
    %979 = vmatprep.subr.mxu0 0.0
    %980 = vmatpush1.msra.mxu0 0.0
    %981 = vmatprep.subr.mxu0 0.0
    %982 = vmatpush1.msra.mxu0 0.0
    %983 = vmatprep.subr.mxu0 0.0
    %984 = vmatpush1.msra.mxu0 0.0
    %985 = vmatprep.subr.mxu0 0.0
    %986 = vmatpush1.msra.mxu0 0.0
    %987 = vmatprep.subr.mxu0 0.0
    %988 = vmatpush1.msra.mxu0 0.0
    %989 = vmatprep.subr.mxu0 0.0
    %v990 = vand.u32 %v650, 4294901760
    %v991 = vsub.f32 %v650, %v990
    %v992 = vand.u32 %v991, 4294901760
    %993 = vmatpush1.msra.mxu0 %v992
    %994 = vmatprep.subr.mxu0 0.0
    %v995 = vand.u32 %v643, 4294901760
    %v996 = vsub.f32 %v643, %v995
    %v997 = vand.u32 %v996, 4294901760
    %998 = vmatpush1.msra.mxu0 %v997
    %999 = vmatprep.subr.mxu0 0.0
    %1000 = vmatpush2.msra.mxu0 0.0
    %1001 = vmatprep.subr.mxu0 0.0
    %1002 = vmatpush2.msra.mxu0 0.0
    %1003 = vmatprep.subr.mxu0 0.0
    %1004 = vmatpush2.msra.mxu0 0.0
    %1005 = vmatprep.subr.mxu0 0.0
    %1006 = vmatpush2.msra.mxu0 0.0
    %1007 = vmatprep.subr.mxu0 0.0
    %1008 = vmatpush2.msra.mxu0 0.0
    %1009 = vmatprep.subr.mxu0 0.0
    %1010 = vmatpush2.msra.mxu0 0.0
    %1011 = vmatprep.subr.mxu0 0.0
    %1012 = vmatpush2.msra.mxu0 0.0
    %1013 = vmatprep.subr.mxu0 0.0
    %1014 = vmatpush2.msra.mxu0 0.0
    %1015 = vmatprep.subr.mxu0 0.0
    %1016 = vmatpush2.msra.mxu0 0.0
    %1017 = vmatprep.subr.mxu0 0.0
    %1018 = vmatpush2.msra.mxu0 0.0
    %1019 = vmatprep.subr.mxu0 0.0
    %1020 = vmatpush2.msra.mxu0 0.0
    %1021 = vmatprep.subr.mxu0 0.0
    %1022 = vmatpush2.msra.mxu0 0.0
    %1023 = vmatprep.subr.mxu0 0.0
    %1024 = vmatpush2.msra.mxu0 0.0
    %1025 = vmatprep.subr.mxu0 0.0
    %1026 = vmatpush2.msra.mxu0 0.0
    %1027 = vmatprep.subr.mxu0 0.0
    %1028 = vmatpush2.msra.mxu0 0.0
    %1029 = vmatprep.subr.mxu0 0.0
    %1030 = vmatpush2.msra.mxu0 0.0
    %1031 = vmatprep.mubr.f32.mxu0 0.0
    %v1032 = vand.u32 %v647, 4294901760
    %1033 = vmatmul.mubr.f32.gmra.mxu0 %v1032
    %v1034 = vpop.f32.mrf.mxu0
    %v1035 = vadd.f32 %v958, %v1034
    %v1036 = vpop.f32.mrf.mxu0
    %1037 = vdwg.mxu0
    %1038 = vmatprep.subr.mxu0 0.0
    %1039 = vmatpush1.msra.mxu0 0.0
    %1040 = vmatprep.subr.mxu0 0.0
    %1041 = vmatpush1.msra.mxu0 0.0
    %1042 = vmatprep.subr.mxu0 0.0
    %1043 = vmatpush1.msra.mxu0 0.0
    %1044 = vmatprep.subr.mxu0 0.0
    %1045 = vmatpush1.msra.mxu0 0.0
    %1046 = vmatprep.subr.mxu0 0.0
    %1047 = vmatpush1.msra.mxu0 0.0
    %1048 = vmatprep.subr.mxu0 0.0
    %1049 = vmatpush1.msra.mxu0 0.0
    %1050 = vmatprep.subr.mxu0 0.0
    %1051 = vmatpush1.msra.mxu0 0.0
    %1052 = vmatprep.subr.mxu0 0.0
    %1053 = vmatpush1.msra.mxu0 0.0
    %1054 = vmatprep.subr.mxu0 0.0
    %1055 = vmatpush1.msra.mxu0 0.0
    %1056 = vmatprep.subr.mxu0 0.0
    %1057 = vmatpush1.msra.mxu0 0.0
    %1058 = vmatprep.subr.mxu0 0.0
    %1059 = vmatpush1.msra.mxu0 0.0
    %1060 = vmatprep.subr.mxu0 0.0
    %1061 = vmatpush1.msra.mxu0 0.0
    %1062 = vmatprep.subr.mxu0 0.0
    %1063 = vmatpush1.msra.mxu0 0.0
    %1064 = vmatprep.subr.mxu0 0.0
    %1065 = vmatpush1.msra.mxu0 0.0
    %1066 = vmatprep.subr.mxu0 0.0
    %v1067 = vand.u32 %v650, 4294901760
    %1068 = vmatpush1.msra.mxu0 %v1067
    %1069 = vmatprep.subr.mxu0 0.0
    %v1070 = vand.u32 %v643, 4294901760
    %1071 = vmatpush1.msra.mxu0 %v1070
    %1072 = vmatprep.subr.mxu0 0.0
    %1073 = vmatpush2.msra.mxu0 0.0
    %1074 = vmatprep.subr.mxu0 0.0
    %1075 = vmatpush2.msra.mxu0 0.0
    %1076 = vmatprep.subr.mxu0 0.0
    %1077 = vmatpush2.msra.mxu0 0.0
    %1078 = vmatprep.subr.mxu0 0.0
    %1079 = vmatpush2.msra.mxu0 0.0
    %1080 = vmatprep.subr.mxu0 0.0
    %1081 = vmatpush2.msra.mxu0 0.0
    %1082 = vmatprep.subr.mxu0 0.0
    %1083 = vmatpush2.msra.mxu0 0.0
    %1084 = vmatprep.subr.mxu0 0.0
    %1085 = vmatpush2.msra.mxu0 0.0
    %1086 = vmatprep.subr.mxu0 0.0
    %1087 = vmatpush2.msra.mxu0 0.0
    %1088 = vmatprep.subr.mxu0 0.0
    %1089 = vmatpush2.msra.mxu0 0.0
    %1090 = vmatprep.subr.mxu0 0.0
    %1091 = vmatpush2.msra.mxu0 0.0
    %1092 = vmatprep.subr.mxu0 0.0
    %1093 = vmatpush2.msra.mxu0 0.0
    %1094 = vmatprep.subr.mxu0 0.0
    %1095 = vmatpush2.msra.mxu0 0.0
    %1096 = vmatprep.subr.mxu0 0.0
    %1097 = vmatpush2.msra.mxu0 0.0
    %1098 = vmatprep.subr.mxu0 0.0
    %1099 = vmatpush2.msra.mxu0 0.0
    %1100 = vmatprep.subr.mxu0 0.0
    %1101 = vmatpush2.msra.mxu0 0.0
    %1102 = vmatprep.subr.mxu0 0.0
    %1103 = vmatpush2.msra.mxu0 0.0
    %1104 = vmatprep.mubr.f32.mxu0 0.0
    %v1105 = vand.u32 %v647, 4294901760
    %1106 = vmatmul.mubr.f32.gmra.mxu0 %v1105
    %v1107 = vpop.f32.mrf.mxu0
    %v1108 = vadd.f32 %v1035, %v1107
    %v1109 = vpop.f32.mrf.mxu0
    %1110 = vdwg.mxu0
    %v1111 = vld [vmem:[#allocation10] sm:$0xff]
    %v1112 = vld [vmem:[#allocation10 + $0x8] sm:$0xf]
    %v1114 = vsel %vm121, %v1112, 0
    %1116 = vmatprep.subr.mxu0 0.0
    %1117 = vmatpush1.msra.mxu0 0.0
    %1118 = vmatprep.subr.mxu0 0.0
    %1119 = vmatpush1.msra.mxu0 0.0
    %1120 = vmatprep.subr.mxu0 0.0
    %1121 = vmatpush1.msra.mxu0 0.0
    %1122 = vmatprep.subr.mxu0 0.0
    %1123 = vmatpush1.msra.mxu0 0.0
    %1124 = vmatprep.subr.mxu0 0.0
    %1125 = vmatpush1.msra.mxu0 0.0
    %1126 = vmatprep.subr.mxu0 0.0
    %1127 = vmatpush1.msra.mxu0 0.0
    %1128 = vmatprep.subr.mxu0 0.0
    %1129 = vmatpush1.msra.mxu0 0.0
    %1130 = vmatprep.subr.mxu0 0.0
    %1131 = vmatpush1.msra.mxu0 0.0
    %1132 = vmatprep.subr.mxu0 0.0
    %1133 = vmatpush1.msra.mxu0 0.0
    %1134 = vmatprep.subr.mxu0 0.0
    %1135 = vmatpush1.msra.mxu0 0.0
    %1136 = vmatprep.subr.mxu0 0.0
    %1137 = vmatpush1.msra.mxu0 0.0
    %1138 = vmatprep.subr.mxu0 0.0
    %1139 = vmatpush1.msra.mxu0 0.0
    %1140 = vmatprep.subr.mxu0 0.0
    %1141 = vmatpush1.msra.mxu0 0.0
    %1142 = vmatprep.subr.mxu0 0.0
    %1143 = vmatpush1.msra.mxu0 0.0
    %1144 = vmatprep.subr.mxu0 0.0
    %v1145 = vand.u32 %v1114, 4294901760
    %1146 = vmatpush1.msra.mxu0 %v1145
    %1147 = vmatprep.subr.mxu0 0.0
    %v1148 = vand.u32 %v1111, 4294901760
    %1149 = vmatpush1.msra.mxu0 %v1148
    %1150 = vmatprep.subr.mxu0 0.0
    %1151 = vmatpush2.msra.mxu0 0.0
    %1152 = vmatprep.subr.mxu0 0.0
    %1153 = vmatpush2.msra.mxu0 0.0
    %1154 = vmatprep.subr.mxu0 0.0
    %1155 = vmatpush2.msra.mxu0 0.0
    %1156 = vmatprep.subr.mxu0 0.0
    %1157 = vmatpush2.msra.mxu0 0.0
    %1158 = vmatprep.subr.mxu0 0.0
    %1159 = vmatpush2.msra.mxu0 0.0
    %1160 = vmatprep.subr.mxu0 0.0
    %1161 = vmatpush2.msra.mxu0 0.0
    %1162 = vmatprep.subr.mxu0 0.0
    %1163 = vmatpush2.msra.mxu0 0.0
    %1164 = vmatprep.subr.mxu0 0.0
    %1165 = vmatpush2.msra.mxu0 0.0
    %1166 = vmatprep.subr.mxu0 0.0
    %1167 = vmatpush2.msra.mxu0 0.0
    %1168 = vmatprep.subr.mxu0 0.0
    %1169 = vmatpush2.msra.mxu0 0.0
    %1170 = vmatprep.subr.mxu0 0.0
    %1171 = vmatpush2.msra.mxu0 0.0
    %1172 = vmatprep.subr.mxu0 0.0
    %1173 = vmatpush2.msra.mxu0 0.0
    %1174 = vmatprep.subr.mxu0 0.0
    %1175 = vmatpush2.msra.mxu0 0.0
    %1176 = vmatprep.subr.mxu0 0.0
    %1177 = vmatpush2.msra.mxu0 0.0
    %1178 = vmatprep.subr.mxu0 0.0
    %1179 = vmatpush2.msra.mxu0 0.0
    %1180 = vmatprep.subr.mxu0 0.0
    %1181 = vmatpush2.msra.mxu0 0.0
    %1182 = vmatprep.mubr.f32.mxu0 0.0
    %v1183 = vand.u32 %v647, 4294901760
    %v1184 = vsub.f32 %v647, %v1183
    %v1185 = vand.u32 %v1184, 4294901760
    %v1186 = vsub.f32 %v1184, %v1185
    %v1187 = vand.u32 %v1186, 4294901760
    %1188 = vmatmul.mubr.f32.gmra.mxu0 %v1187
    %v1189 = vpop.f32.mrf.mxu0
    %v1190 = vadd.f32 0.0, %v1189
    %v1191 = vpop.f32.mrf.mxu0
    %1192 = vdwg.mxu0
    %1193 = vmatprep.subr.mxu0 0.0
    %1194 = vmatpush1.msra.mxu0 0.0
    %1195 = vmatprep.subr.mxu0 0.0
    %1196 = vmatpush1.msra.mxu0 0.0
    %1197 = vmatprep.subr.mxu0 0.0
    %1198 = vmatpush1.msra.mxu0 0.0
    %1199 = vmatprep.subr.mxu0 0.0
    %1200 = vmatpush1.msra.mxu0 0.0
    %1201 = vmatprep.subr.mxu0 0.0
    %1202 = vmatpush1.msra.mxu0 0.0
    %1203 = vmatprep.subr.mxu0 0.0
    %1204 = vmatpush1.msra.mxu0 0.0
    %1205 = vmatprep.subr.mxu0 0.0
    %1206 = vmatpush1.msra.mxu0 0.0
    %1207 = vmatprep.subr.mxu0 0.0
    %1208 = vmatpush1.msra.mxu0 0.0
    %1209 = vmatprep.subr.mxu0 0.0
    %1210 = vmatpush1.msra.mxu0 0.0
    %1211 = vmatprep.subr.mxu0 0.0
    %1212 = vmatpush1.msra.mxu0 0.0
    %1213 = vmatprep.subr.mxu0 0.0
    %1214 = vmatpush1.msra.mxu0 0.0
    %1215 = vmatprep.subr.mxu0 0.0
    %1216 = vmatpush1.msra.mxu0 0.0
    %1217 = vmatprep.subr.mxu0 0.0
    %1218 = vmatpush1.msra.mxu0 0.0
    %1219 = vmatprep.subr.mxu0 0.0
    %1220 = vmatpush1.msra.mxu0 0.0
    %1221 = vmatprep.subr.mxu0 0.0
    %v1222 = vand.u32 %v1114, 4294901760
    %v1223 = vsub.f32 %v1114, %v1222
    %v1224 = vand.u32 %v1223, 4294901760
    %v1225 = vsub.f32 %v1223, %v1224
    %v1226 = vand.u32 %v1225, 4294901760
    %1227 = vmatpush1.msra.mxu0 %v1226
    %1228 = vmatprep.subr.mxu0 0.0
    %v1229 = vand.u32 %v1111, 4294901760
    %v1230 = vsub.f32 %v1111, %v1229
    %v1231 = vand.u32 %v1230, 4294901760
    %v1232 = vsub.f32 %v1230, %v1231
    %v1233 = vand.u32 %v1232, 4294901760
    %1234 = vmatpush1.msra.mxu0 %v1233
    %1235 = vmatprep.subr.mxu0 0.0
    %1236 = vmatpush2.msra.mxu0 0.0
    %1237 = vmatprep.subr.mxu0 0.0
    %1238 = vmatpush2.msra.mxu0 0.0
    %1239 = vmatprep.subr.mxu0 0.0
    %1240 = vmatpush2.msra.mxu0 0.0
    %1241 = vmatprep.subr.mxu0 0.0
    %1242 = vmatpush2.msra.mxu0 0.0
    %1243 = vmatprep.subr.mxu0 0.0
    %1244 = vmatpush2.msra.mxu0 0.0
    %1245 = vmatprep.subr.mxu0 0.0
    %1246 = vmatpush2.msra.mxu0 0.0
    %1247 = vmatprep.subr.mxu0 0.0
    %1248 = vmatpush2.msra.mxu0 0.0
    %1249 = vmatprep.subr.mxu0 0.0
    %1250 = vmatpush2.msra.mxu0 0.0
    %1251 = vmatprep.subr.mxu0 0.0
    %1252 = vmatpush2.msra.mxu0 0.0
    %1253 = vmatprep.subr.mxu0 0.0
    %1254 = vmatpush2.msra.mxu0 0.0
    %1255 = vmatprep.subr.mxu0 0.0
    %1256 = vmatpush2.msra.mxu0 0.0
    %1257 = vmatprep.subr.mxu0 0.0
    %1258 = vmatpush2.msra.mxu0 0.0
    %1259 = vmatprep.subr.mxu0 0.0
    %1260 = vmatpush2.msra.mxu0 0.0
    %1261 = vmatprep.subr.mxu0 0.0
    %1262 = vmatpush2.msra.mxu0 0.0
    %1263 = vmatprep.subr.mxu0 0.0
    %1264 = vmatpush2.msra.mxu0 0.0
    %1265 = vmatprep.subr.mxu0 0.0
    %1266 = vmatpush2.msra.mxu0 0.0
    %1267 = vmatprep.mubr.f32.mxu0 0.0
    %v1268 = vand.u32 %v647, 4294901760
    %1269 = vmatmul.mubr.f32.gmra.mxu0 %v1268
    %v1270 = vpop.f32.mrf.mxu0
    %v1271 = vadd.f32 %v1190, %v1270
    %v1272 = vpop.f32.mrf.mxu0
    %1273 = vdwg.mxu0
    %1274 = vmatprep.subr.mxu0 0.0
    %1275 = vmatpush1.msra.mxu0 0.0
    %1276 = vmatprep.subr.mxu0 0.0
    %1277 = vmatpush1.msra.mxu0 0.0
    %1278 = vmatprep.subr.mxu0 0.0
    %1279 = vmatpush1.msra.mxu0 0.0
    %1280 = vmatprep.subr.mxu0 0.0
    %1281 = vmatpush1.msra.mxu0 0.0
    %1282 = vmatprep.subr.mxu0 0.0
    %1283 = vmatpush1.msra.mxu0 0.0
    %1284 = vmatprep.subr.mxu0 0.0
    %1285 = vmatpush1.msra.mxu0 0.0
    %1286 = vmatprep.subr.mxu0 0.0
    %1287 = vmatpush1.msra.mxu0 0.0
    %1288 = vmatprep.subr.mxu0 0.0
    %1289 = vmatpush1.msra.mxu0 0.0
    %1290 = vmatprep.subr.mxu0 0.0
    %1291 = vmatpush1.msra.mxu0 0.0
    %1292 = vmatprep.subr.mxu0 0.0
    %1293 = vmatpush1.msra.mxu0 0.0
    %1294 = vmatprep.subr.mxu0 0.0
    %1295 = vmatpush1.msra.mxu0 0.0
    %1296 = vmatprep.subr.mxu0 0.0
    %1297 = vmatpush1.msra.mxu0 0.0
    %1298 = vmatprep.subr.mxu0 0.0
    %1299 = vmatpush1.msra.mxu0 0.0
    %1300 = vmatprep.subr.mxu0 0.0
    %1301 = vmatpush1.msra.mxu0 0.0
    %1302 = vmatprep.subr.mxu0 0.0
    %v1303 = vand.u32 %v1114, 4294901760
    %v1304 = vsub.f32 %v1114, %v1303
    %1305 = vmatpush1.msra.mxu0 %v1304
    %1306 = vmatprep.subr.mxu0 0.0
    %v1307 = vand.u32 %v1111, 4294901760
    %v1308 = vsub.f32 %v1111, %v1307
    %1309 = vmatpush1.msra.mxu0 %v1308
    %1310 = vmatprep.subr.mxu0 0.0
    %1311 = vmatpush2.msra.mxu0 0.0
    %1312 = vmatprep.subr.mxu0 0.0
    %1313 = vmatpush2.msra.mxu0 0.0
    %1314 = vmatprep.subr.mxu0 0.0
    %1315 = vmatpush2.msra.mxu0 0.0
    %1316 = vmatprep.subr.mxu0 0.0
    %1317 = vmatpush2.msra.mxu0 0.0
    %1318 = vmatprep.subr.mxu0 0.0
    %1319 = vmatpush2.msra.mxu0 0.0
    %1320 = vmatprep.subr.mxu0 0.0
    %1321 = vmatpush2.msra.mxu0 0.0
    %1322 = vmatprep.subr.mxu0 0.0
    %1323 = vmatpush2.msra.mxu0 0.0
    %1324 = vmatprep.subr.mxu0 0.0
    %1325 = vmatpush2.msra.mxu0 0.0
    %1326 = vmatprep.subr.mxu0 0.0
    %1327 = vmatpush2.msra.mxu0 0.0
    %1328 = vmatprep.subr.mxu0 0.0
    %1329 = vmatpush2.msra.mxu0 0.0
    %1330 = vmatprep.subr.mxu0 0.0
    %1331 = vmatpush2.msra.mxu0 0.0
    %1332 = vmatprep.subr.mxu0 0.0
    %1333 = vmatpush2.msra.mxu0 0.0
    %1334 = vmatprep.subr.mxu0 0.0
    %1335 = vmatpush2.msra.mxu0 0.0
    %1336 = vmatprep.subr.mxu0 0.0
    %1337 = vmatpush2.msra.mxu0 0.0
    %1338 = vmatprep.subr.mxu0 0.0
    %1339 = vmatpush2.msra.mxu0 0.0
    %1340 = vmatprep.subr.mxu0 0.0
    %1341 = vmatpush2.msra.mxu0 0.0
    %1342 = vmatprep.mubr.f32.mxu0 0.0
    %v1343 = vand.u32 %v647, 4294901760
    %v1344 = vsub.f32 %v647, %v1343
    %1345 = vmatmul.mubr.f32.gmra.mxu0 %v1344
    %v1346 = vpop.f32.mrf.mxu0
    %v1347 = vadd.f32 %v1271, %v1346
    %v1348 = vpop.f32.mrf.mxu0
    %1349 = vdwg.mxu0
    %1350 = vmatprep.subr.mxu0 0.0
    %1351 = vmatpush1.msra.mxu0 0.0
    %1352 = vmatprep.subr.mxu0 0.0
    %1353 = vmatpush1.msra.mxu0 0.0
    %1354 = vmatprep.subr.mxu0 0.0
    %1355 = vmatpush1.msra.mxu0 0.0
    %1356 = vmatprep.subr.mxu0 0.0
    %1357 = vmatpush1.msra.mxu0 0.0
    %1358 = vmatprep.subr.mxu0 0.0
    %1359 = vmatpush1.msra.mxu0 0.0
    %1360 = vmatprep.subr.mxu0 0.0
    %1361 = vmatpush1.msra.mxu0 0.0
    %1362 = vmatprep.subr.mxu0 0.0
    %1363 = vmatpush1.msra.mxu0 0.0
    %1364 = vmatprep.subr.mxu0 0.0
    %1365 = vmatpush1.msra.mxu0 0.0
    %1366 = vmatprep.subr.mxu0 0.0
    %1367 = vmatpush1.msra.mxu0 0.0
    %1368 = vmatprep.subr.mxu0 0.0
    %1369 = vmatpush1.msra.mxu0 0.0
    %1370 = vmatprep.subr.mxu0 0.0
    %1371 = vmatpush1.msra.mxu0 0.0
    %1372 = vmatprep.subr.mxu0 0.0
    %1373 = vmatpush1.msra.mxu0 0.0
    %1374 = vmatprep.subr.mxu0 0.0
    %1375 = vmatpush1.msra.mxu0 0.0
    %1376 = vmatprep.subr.mxu0 0.0
    %1377 = vmatpush1.msra.mxu0 0.0
    %1378 = vmatprep.subr.mxu0 0.0
    %v1379 = vand.u32 %v1114, 4294901760
    %1380 = vmatpush1.msra.mxu0 %v1379
    %1381 = vmatprep.subr.mxu0 0.0
    %v1382 = vand.u32 %v1111, 4294901760
    %1383 = vmatpush1.msra.mxu0 %v1382
    %1384 = vmatprep.subr.mxu0 0.0
    %1385 = vmatpush2.msra.mxu0 0.0
    %1386 = vmatprep.subr.mxu0 0.0
    %1387 = vmatpush2.msra.mxu0 0.0
    %1388 = vmatprep.subr.mxu0 0.0
    %1389 = vmatpush2.msra.mxu0 0.0
    %1390 = vmatprep.subr.mxu0 0.0
    %1391 = vmatpush2.msra.mxu0 0.0
    %1392 = vmatprep.subr.mxu0 0.0
    %1393 = vmatpush2.msra.mxu0 0.0
    %1394 = vmatprep.subr.mxu0 0.0
    %1395 = vmatpush2.msra.mxu0 0.0
    %1396 = vmatprep.subr.mxu0 0.0
    %1397 = vmatpush2.msra.mxu0 0.0
    %1398 = vmatprep.subr.mxu0 0.0
    %1399 = vmatpush2.msra.mxu0 0.0
    %1400 = vmatprep.subr.mxu0 0.0
    %1401 = vmatpush2.msra.mxu0 0.0
    %1402 = vmatprep.subr.mxu0 0.0
    %1403 = vmatpush2.msra.mxu0 0.0
    %1404 = vmatprep.subr.mxu0 0.0
    %1405 = vmatpush2.msra.mxu0 0.0
    %1406 = vmatprep.subr.mxu0 0.0
    %1407 = vmatpush2.msra.mxu0 0.0
    %1408 = vmatprep.subr.mxu0 0.0
    %1409 = vmatpush2.msra.mxu0 0.0
    %1410 = vmatprep.subr.mxu0 0.0
    %1411 = vmatpush2.msra.mxu0 0.0
    %1412 = vmatprep.subr.mxu0 0.0
    %1413 = vmatpush2.msra.mxu0 0.0
    %1414 = vmatprep.subr.mxu0 0.0
    %1415 = vmatpush2.msra.mxu0 0.0
    %1416 = vmatprep.mubr.f32.mxu0 0.0
    %v1417 = vand.u32 %v647, 4294901760
    %v1418 = vsub.f32 %v647, %v1417
    %v1419 = vand.u32 %v1418, 4294901760
    %1420 = vmatmul.mubr.f32.gmra.mxu0 %v1419
    %v1421 = vpop.f32.mrf.mxu0
    %v1422 = vadd.f32 %v1347, %v1421
    %v1423 = vpop.f32.mrf.mxu0
    %1424 = vdwg.mxu0
    %1425 = vmatprep.subr.mxu0 0.0
    %1426 = vmatpush1.msra.mxu0 0.0
    %1427 = vmatprep.subr.mxu0 0.0
    %1428 = vmatpush1.msra.mxu0 0.0
    %1429 = vmatprep.subr.mxu0 0.0
    %1430 = vmatpush1.msra.mxu0 0.0
    %1431 = vmatprep.subr.mxu0 0.0
    %1432 = vmatpush1.msra.mxu0 0.0
    %1433 = vmatprep.subr.mxu0 0.0
    %1434 = vmatpush1.msra.mxu0 0.0
    %1435 = vmatprep.subr.mxu0 0.0
    %1436 = vmatpush1.msra.mxu0 0.0
    %1437 = vmatprep.subr.mxu0 0.0
    %1438 = vmatpush1.msra.mxu0 0.0
    %1439 = vmatprep.subr.mxu0 0.0
    %1440 = vmatpush1.msra.mxu0 0.0
    %1441 = vmatprep.subr.mxu0 0.0
    %1442 = vmatpush1.msra.mxu0 0.0
    %1443 = vmatprep.subr.mxu0 0.0
    %1444 = vmatpush1.msra.mxu0 0.0
    %1445 = vmatprep.subr.mxu0 0.0
    %1446 = vmatpush1.msra.mxu0 0.0
    %1447 = vmatprep.subr.mxu0 0.0
    %1448 = vmatpush1.msra.mxu0 0.0
    %1449 = vmatprep.subr.mxu0 0.0
    %1450 = vmatpush1.msra.mxu0 0.0
    %1451 = vmatprep.subr.mxu0 0.0
    %1452 = vmatpush1.msra.mxu0 0.0
    %1453 = vmatprep.subr.mxu0 0.0
    %v1454 = vand.u32 %v1114, 4294901760
    %v1455 = vsub.f32 %v1114, %v1454
    %v1456 = vand.u32 %v1455, 4294901760
    %1457 = vmatpush1.msra.mxu0 %v1456
    %1458 = vmatprep.subr.mxu0 0.0
    %v1459 = vand.u32 %v1111, 4294901760
    %v1460 = vsub.f32 %v1111, %v1459
    %v1461 = vand.u32 %v1460, 4294901760
    %1462 = vmatpush1.msra.mxu0 %v1461
    %1463 = vmatprep.subr.mxu0 0.0
    %1464 = vmatpush2.msra.mxu0 0.0
    %1465 = vmatprep.subr.mxu0 0.0
    %1466 = vmatpush2.msra.mxu0 0.0
    %1467 = vmatprep.subr.mxu0 0.0
    %1468 = vmatpush2.msra.mxu0 0.0
    %1469 = vmatprep.subr.mxu0 0.0
    %1470 = vmatpush2.msra.mxu0 0.0
    %1471 = vmatprep.subr.mxu0 0.0
    %1472 = vmatpush2.msra.mxu0 0.0
    %1473 = vmatprep.subr.mxu0 0.0
    %1474 = vmatpush2.msra.mxu0 0.0
    %1475 = vmatprep.subr.mxu0 0.0
    %1476 = vmatpush2.msra.mxu0 0.0
    %1477 = vmatprep.subr.mxu0 0.0
    %1478 = vmatpush2.msra.mxu0 0.0
    %1479 = vmatprep.subr.mxu0 0.0
    %1480 = vmatpush2.msra.mxu0 0.0
    %1481 = vmatprep.subr.mxu0 0.0
    %1482 = vmatpush2.msra.mxu0 0.0
    %1483 = vmatprep.subr.mxu0 0.0
    %1484 = vmatpush2.msra.mxu0 0.0
    %1485 = vmatprep.subr.mxu0 0.0
    %1486 = vmatpush2.msra.mxu0 0.0
    %1487 = vmatprep.subr.mxu0 0.0
    %1488 = vmatpush2.msra.mxu0 0.0
    %1489 = vmatprep.subr.mxu0 0.0
    %1490 = vmatpush2.msra.mxu0 0.0
    %1491 = vmatprep.subr.mxu0 0.0
    %1492 = vmatpush2.msra.mxu0 0.0
    %1493 = vmatprep.subr.mxu0 0.0
    %1494 = vmatpush2.msra.mxu0 0.0
    %1495 = vmatprep.mubr.f32.mxu0 0.0
    %v1496 = vand.u32 %v647, 4294901760
    %1497 = vmatmul.mubr.f32.gmra.mxu0 %v1496
    %v1498 = vpop.f32.mrf.mxu0
    %v1499 = vadd.f32 %v1422, %v1498
    %v1500 = vpop.f32.mrf.mxu0
    %1501 = vdwg.mxu0
    %1502 = vmatprep.subr.mxu0 0.0
    %1503 = vmatpush1.msra.mxu0 0.0
    %1504 = vmatprep.subr.mxu0 0.0
    %1505 = vmatpush1.msra.mxu0 0.0
    %1506 = vmatprep.subr.mxu0 0.0
    %1507 = vmatpush1.msra.mxu0 0.0
    %1508 = vmatprep.subr.mxu0 0.0
    %1509 = vmatpush1.msra.mxu0 0.0
    %1510 = vmatprep.subr.mxu0 0.0
    %1511 = vmatpush1.msra.mxu0 0.0
    %1512 = vmatprep.subr.mxu0 0.0
    %1513 = vmatpush1.msra.mxu0 0.0
    %1514 = vmatprep.subr.mxu0 0.0
    %1515 = vmatpush1.msra.mxu0 0.0
    %1516 = vmatprep.subr.mxu0 0.0
    %1517 = vmatpush1.msra.mxu0 0.0
    %1518 = vmatprep.subr.mxu0 0.0
    %1519 = vmatpush1.msra.mxu0 0.0
    %1520 = vmatprep.subr.mxu0 0.0
    %1521 = vmatpush1.msra.mxu0 0.0
    %1522 = vmatprep.subr.mxu0 0.0
    %1523 = vmatpush1.msra.mxu0 0.0
    %1524 = vmatprep.subr.mxu0 0.0
    %1525 = vmatpush1.msra.mxu0 0.0
    %1526 = vmatprep.subr.mxu0 0.0
    %1527 = vmatpush1.msra.mxu0 0.0
    %1528 = vmatprep.subr.mxu0 0.0
    %1529 = vmatpush1.msra.mxu0 0.0
    %1530 = vmatprep.subr.mxu0 0.0
    %v1531 = vand.u32 %v1114, 4294901760
    %1532 = vmatpush1.msra.mxu0 %v1531
    %1533 = vmatprep.subr.mxu0 0.0
    %v1534 = vand.u32 %v1111, 4294901760
    %1535 = vmatpush1.msra.mxu0 %v1534
    %1536 = vmatprep.subr.mxu0 0.0
    %1537 = vmatpush2.msra.mxu0 0.0
    %1538 = vmatprep.subr.mxu0 0.0
    %1539 = vmatpush2.msra.mxu0 0.0
    %1540 = vmatprep.subr.mxu0 0.0
    %1541 = vmatpush2.msra.mxu0 0.0
    %1542 = vmatprep.subr.mxu0 0.0
    %1543 = vmatpush2.msra.mxu0 0.0
    %1544 = vmatprep.subr.mxu0 0.0
    %1545 = vmatpush2.msra.mxu0 0.0
    %1546 = vmatprep.subr.mxu0 0.0
    %1547 = vmatpush2.msra.mxu0 0.0
    %1548 = vmatprep.subr.mxu0 0.0
    %1549 = vmatpush2.msra.mxu0 0.0
    %1550 = vmatprep.subr.mxu0 0.0
    %1551 = vmatpush2.msra.mxu0 0.0
    %1552 = vmatprep.subr.mxu0 0.0
    %1553 = vmatpush2.msra.mxu0 0.0
    %1554 = vmatprep.subr.mxu0 0.0
    %1555 = vmatpush2.msra.mxu0 0.0
    %1556 = vmatprep.subr.mxu0 0.0
    %1557 = vmatpush2.msra.mxu0 0.0
    %1558 = vmatprep.subr.mxu0 0.0
    %1559 = vmatpush2.msra.mxu0 0.0
    %1560 = vmatprep.subr.mxu0 0.0
    %1561 = vmatpush2.msra.mxu0 0.0
    %1562 = vmatprep.subr.mxu0 0.0
    %1563 = vmatpush2.msra.mxu0 0.0
    %1564 = vmatprep.subr.mxu0 0.0
    %1565 = vmatpush2.msra.mxu0 0.0
    %1566 = vmatprep.subr.mxu0 0.0
    %1567 = vmatpush2.msra.mxu0 0.0
    %1568 = vmatprep.mubr.f32.mxu0 0.0
    %v1569 = vand.u32 %v647, 4294901760
    %1570 = vmatmul.mubr.f32.gmra.mxu0 %v1569
    %v1571 = vpop.f32.mrf.mxu0
    %v1572 = vadd.f32 %v1499, %v1571
    %v1573 = vpop.f32.mrf.mxu0
    %1574 = vdwg.mxu0
    %v1575 = vmul.f32 %v1572, %v1572
    %1577 = vrot.lane.b32.xlu0 %v1575, 120
    %v1578 = vpop.permute.xlu0 %1577
    %v1580 = vadd.f32 %v1575, %v1578
    %v1581 = vadd.f32 %v1580, 1e-12
    %v1582 = vrsqrt.pop %v1581
    %v1583 = vmul.f32 %v1581, %v1582
    %vm1584 = vcmp.eq.f32.partialorder %v1581, inf
    %v1585 = vsel %vm1584, %v1581, %v1583
    %vm1586 = vcmp.eq.f32.partialorder %v1581, 0.0
    %v1587 = vand.u32 %v1581, 2147483648
    %v1588 = vsel %vm1586, %v1587, %v1585
    %v1589 = vmul.f32 %v1588, -12.0
    %v1590 = vadd.f32 %v1589, 3.0
    %1592 = vrot.lane.b32.xlu0 %v1590, 8
    %v1593 = vpop.permute.xlu0 %1592
    %v1595 = vsel %vm641, %v1108, %v1593
    %v1596 = vxor.u32 %v1595, 2147483648
    %v1597 = vmul.f32 %v1596, 1.442695
    %v1598 = vpow.pop %v1597
    %v1599 = vadd.f32 %v1598, 1.0
    %v1600 = vrcp.pop %v1599
    %v1601 = vmul.f32 1.0, %v1600
    %v1602 = vld [vmem:[#allocation11] sm:$0xff]
    %v1603 = vld [vmem:[#allocation11 + $0x8] sm:$0xff]
    %vm1604 = vcmask 130048
    %v1606 = vsel %vm1604, %v1601, 0
    %1608 = vmatprep.subr.mxu0 0.0
    %1609 = vmatpush1.msra.mxu0 0.0
    %1610 = vmatprep.subr.mxu0 0.0
    %1611 = vmatpush1.msra.mxu0 0.0
    %1612 = vmatprep.subr.mxu0 0.0
    %1613 = vmatpush1.msra.mxu0 0.0
    %1614 = vmatprep.subr.mxu0 0.0
    %1615 = vmatpush1.msra.mxu0 0.0
    %1616 = vmatprep.subr.mxu0 0.0
    %1617 = vmatpush1.msra.mxu0 0.0
    %1618 = vmatprep.subr.mxu0 0.0
    %1619 = vmatpush1.msra.mxu0 0.0
    %1620 = vmatprep.subr.mxu0 0.0
    %1621 = vmatpush1.msra.mxu0 0.0
    %1622 = vmatprep.subr.mxu0 0.0
    %1623 = vmatpush1.msra.mxu0 0.0
    %1624 = vmatprep.subr.mxu0 0.0
    %1625 = vmatpush1.msra.mxu0 0.0
    %1626 = vmatprep.subr.mxu0 0.0
    %1627 = vmatpush1.msra.mxu0 0.0
    %1628 = vmatprep.subr.mxu0 0.0
    %1629 = vmatpush1.msra.mxu0 0.0
    %1630 = vmatprep.subr.mxu0 0.0
    %1631 = vmatpush1.msra.mxu0 0.0
    %1632 = vmatprep.subr.mxu0 0.0
    %1633 = vmatpush1.msra.mxu0 0.0
    %1634 = vmatprep.subr.mxu0 0.0
    %1635 = vmatpush1.msra.mxu0 0.0
    %1636 = vmatprep.subr.mxu0 0.0
    %v1637 = vand.u32 %v1603, 4294901760
    %1638 = vmatpush1.msra.mxu0 %v1637
    %1639 = vmatprep.subr.mxu0 0.0
    %v1640 = vand.u32 %v1602, 4294901760
    %1641 = vmatpush1.msra.mxu0 %v1640
    %1642 = vmatprep.subr.mxu0 0.0
    %1643 = vmatpush2.msra.mxu0 0.0
    %1644 = vmatprep.subr.mxu0 0.0
    %1645 = vmatpush2.msra.mxu0 0.0
    %1646 = vmatprep.subr.mxu0 0.0
    %1647 = vmatpush2.msra.mxu0 0.0
    %1648 = vmatprep.subr.mxu0 0.0
    %1649 = vmatpush2.msra.mxu0 0.0
    %1650 = vmatprep.subr.mxu0 0.0
    %1651 = vmatpush2.msra.mxu0 0.0
    %1652 = vmatprep.subr.mxu0 0.0
    %1653 = vmatpush2.msra.mxu0 0.0
    %1654 = vmatprep.subr.mxu0 0.0
    %1655 = vmatpush2.msra.mxu0 0.0
    %1656 = vmatprep.subr.mxu0 0.0
    %1657 = vmatpush2.msra.mxu0 0.0
    %1658 = vmatprep.subr.mxu0 0.0
    %1659 = vmatpush2.msra.mxu0 0.0
    %1660 = vmatprep.subr.mxu0 0.0
    %1661 = vmatpush2.msra.mxu0 0.0
    %1662 = vmatprep.subr.mxu0 0.0
    %1663 = vmatpush2.msra.mxu0 0.0
    %1664 = vmatprep.subr.mxu0 0.0
    %1665 = vmatpush2.msra.mxu0 0.0
    %1666 = vmatprep.subr.mxu0 0.0
    %1667 = vmatpush2.msra.mxu0 0.0
    %1668 = vmatprep.subr.mxu0 0.0
    %1669 = vmatpush2.msra.mxu0 0.0
    %1670 = vmatprep.subr.mxu0 0.0
    %1671 = vmatpush2.msra.mxu0 0.0
    %1672 = vmatprep.subr.mxu0 0.0
    %1673 = vmatpush2.msra.mxu0 0.0
    %1674 = vmatprep.mubr.f32.mxu0 0.0
    %v1675 = vand.u32 %v1606, 4294901760
    %v1676 = vsub.f32 %v1606, %v1675
    %v1677 = vand.u32 %v1676, 4294901760
    %v1678 = vsub.f32 %v1676, %v1677
    %v1679 = vand.u32 %v1678, 4294901760
    %1680 = vmatmul.mubr.f32.gmra.mxu0 %v1679
    %v1681 = vpop.f32.mrf.mxu0
    %v1682 = vadd.f32 0.0, %v1681
    %v1683 = vpop.f32.mrf.mxu0
    %1684 = vdwg.mxu0
    %1685 = vmatprep.subr.mxu0 0.0
    %1686 = vmatpush1.msra.mxu0 0.0
    %1687 = vmatprep.subr.mxu0 0.0
    %1688 = vmatpush1.msra.mxu0 0.0
    %1689 = vmatprep.subr.mxu0 0.0
    %1690 = vmatpush1.msra.mxu0 0.0
    %1691 = vmatprep.subr.mxu0 0.0
    %1692 = vmatpush1.msra.mxu0 0.0
    %1693 = vmatprep.subr.mxu0 0.0
    %1694 = vmatpush1.msra.mxu0 0.0
    %1695 = vmatprep.subr.mxu0 0.0
    %1696 = vmatpush1.msra.mxu0 0.0
    %1697 = vmatprep.subr.mxu0 0.0
    %1698 = vmatpush1.msra.mxu0 0.0
    %1699 = vmatprep.subr.mxu0 0.0
    %1700 = vmatpush1.msra.mxu0 0.0
    %1701 = vmatprep.subr.mxu0 0.0
    %1702 = vmatpush1.msra.mxu0 0.0
    %1703 = vmatprep.subr.mxu0 0.0
    %1704 = vmatpush1.msra.mxu0 0.0
    %1705 = vmatprep.subr.mxu0 0.0
    %1706 = vmatpush1.msra.mxu0 0.0
    %1707 = vmatprep.subr.mxu0 0.0
    %1708 = vmatpush1.msra.mxu0 0.0
    %1709 = vmatprep.subr.mxu0 0.0
    %1710 = vmatpush1.msra.mxu0 0.0
    %1711 = vmatprep.subr.mxu0 0.0
    %1712 = vmatpush1.msra.mxu0 0.0
    %1713 = vmatprep.subr.mxu0 0.0
    %v1714 = vand.u32 %v1603, 4294901760
    %v1715 = vsub.f32 %v1603, %v1714
    %v1716 = vand.u32 %v1715, 4294901760
    %v1717 = vsub.f32 %v1715, %v1716
    %v1718 = vand.u32 %v1717, 4294901760
    %1719 = vmatpush1.msra.mxu0 %v1718
    %1720 = vmatprep.subr.mxu0 0.0
    %v1721 = vand.u32 %v1602, 4294901760
    %v1722 = vsub.f32 %v1602, %v1721
    %v1723 = vand.u32 %v1722, 4294901760
    %v1724 = vsub.f32 %v1722, %v1723
    %v1725 = vand.u32 %v1724, 4294901760
    %1726 = vmatpush1.msra.mxu0 %v1725
    %1727 = vmatprep.subr.mxu0 0.0
    %1728 = vmatpush2.msra.mxu0 0.0
    %1729 = vmatprep.subr.mxu0 0.0
    %1730 = vmatpush2.msra.mxu0 0.0
    %1731 = vmatprep.subr.mxu0 0.0
    %1732 = vmatpush2.msra.mxu0 0.0
    %1733 = vmatprep.subr.mxu0 0.0
    %1734 = vmatpush2.msra.mxu0 0.0
    %1735 = vmatprep.subr.mxu0 0.0
    %1736 = vmatpush2.msra.mxu0 0.0
    %1737 = vmatprep.subr.mxu0 0.0
    %1738 = vmatpush2.msra.mxu0 0.0
    %1739 = vmatprep.subr.mxu0 0.0
    %1740 = vmatpush2.msra.mxu0 0.0
    %1741 = vmatprep.subr.mxu0 0.0
    %1742 = vmatpush2.msra.mxu0 0.0
    %1743 = vmatprep.subr.mxu0 0.0
    %1744 = vmatpush2.msra.mxu0 0.0
    %1745 = vmatprep.subr.mxu0 0.0
    %1746 = vmatpush2.msra.mxu0 0.0
    %1747 = vmatprep.subr.mxu0 0.0
    %1748 = vmatpush2.msra.mxu0 0.0
    %1749 = vmatprep.subr.mxu0 0.0
    %1750 = vmatpush2.msra.mxu0 0.0
    %1751 = vmatprep.subr.mxu0 0.0
    %1752 = vmatpush2.msra.mxu0 0.0
    %1753 = vmatprep.subr.mxu0 0.0
    %1754 = vmatpush2.msra.mxu0 0.0
    %1755 = vmatprep.subr.mxu0 0.0
    %1756 = vmatpush2.msra.mxu0 0.0
    %1757 = vmatprep.subr.mxu0 0.0
    %1758 = vmatpush2.msra.mxu0 0.0
    %1759 = vmatprep.mubr.f32.mxu0 0.0
    %v1760 = vand.u32 %v1606, 4294901760
    %1761 = vmatmul.mubr.f32.gmra.mxu0 %v1760
    %v1762 = vpop.f32.mrf.mxu0
    %v1763 = vadd.f32 %v1682, %v1762
    %v1764 = vpop.f32.mrf.mxu0
    %1765 = vdwg.mxu0
    %1766 = vmatprep.subr.mxu0 0.0
    %1767 = vmatpush1.msra.mxu0 0.0
    %1768 = vmatprep.subr.mxu0 0.0
    %1769 = vmatpush1.msra.mxu0 0.0
    %1770 = vmatprep.subr.mxu0 0.0
    %1771 = vmatpush1.msra.mxu0 0.0
    %1772 = vmatprep.subr.mxu0 0.0
    %1773 = vmatpush1.msra.mxu0 0.0
    %1774 = vmatprep.subr.mxu0 0.0
    %1775 = vmatpush1.msra.mxu0 0.0
    %1776 = vmatprep.subr.mxu0 0.0
    %1777 = vmatpush1.msra.mxu0 0.0
    %1778 = vmatprep.subr.mxu0 0.0
    %1779 = vmatpush1.msra.mxu0 0.0
    %1780 = vmatprep.subr.mxu0 0.0
    %1781 = vmatpush1.msra.mxu0 0.0
    %1782 = vmatprep.subr.mxu0 0.0
    %1783 = vmatpush1.msra.mxu0 0.0
    %1784 = vmatprep.subr.mxu0 0.0
    %1785 = vmatpush1.msra.mxu0 0.0
    %1786 = vmatprep.subr.mxu0 0.0
    %1787 = vmatpush1.msra.mxu0 0.0
    %1788 = vmatprep.subr.mxu0 0.0
    %1789 = vmatpush1.msra.mxu0 0.0
    %1790 = vmatprep.subr.mxu0 0.0
    %1791 = vmatpush1.msra.mxu0 0.0
    %1792 = vmatprep.subr.mxu0 0.0
    %1793 = vmatpush1.msra.mxu0 0.0
    %1794 = vmatprep.subr.mxu0 0.0
    %v1795 = vand.u32 %v1603, 4294901760
    %v1796 = vsub.f32 %v1603, %v1795
    %1797 = vmatpush1.msra.mxu0 %v1796
    %1798 = vmatprep.subr.mxu0 0.0
    %v1799 = vand.u32 %v1602, 4294901760
    %v1800 = vsub.f32 %v1602, %v1799
    %1801 = vmatpush1.msra.mxu0 %v1800
    %1802 = vmatprep.subr.mxu0 0.0
    %1803 = vmatpush2.msra.mxu0 0.0
    %1804 = vmatprep.subr.mxu0 0.0
    %1805 = vmatpush2.msra.mxu0 0.0
    %1806 = vmatprep.subr.mxu0 0.0
    %1807 = vmatpush2.msra.mxu0 0.0
    %1808 = vmatprep.subr.mxu0 0.0
    %1809 = vmatpush2.msra.mxu0 0.0
    %1810 = vmatprep.subr.mxu0 0.0
    %1811 = vmatpush2.msra.mxu0 0.0
    %1812 = vmatprep.subr.mxu0 0.0
    %1813 = vmatpush2.msra.mxu0 0.0
    %1814 = vmatprep.subr.mxu0 0.0
    %1815 = vmatpush2.msra.mxu0 0.0
    %1816 = vmatprep.subr.mxu0 0.0
    %1817 = vmatpush2.msra.mxu0 0.0
    %1818 = vmatprep.subr.mxu0 0.0
    %1819 = vmatpush2.msra.mxu0 0.0
    %1820 = vmatprep.subr.mxu0 0.0
    %1821 = vmatpush2.msra.mxu0 0.0
    %1822 = vmatprep.subr.mxu0 0.0
    %1823 = vmatpush2.msra.mxu0 0.0
    %1824 = vmatprep.subr.mxu0 0.0
    %1825 = vmatpush2.msra.mxu0 0.0
    %1826 = vmatprep.subr.mxu0 0.0
    %1827 = vmatpush2.msra.mxu0 0.0
    %1828 = vmatprep.subr.mxu0 0.0
    %1829 = vmatpush2.msra.mxu0 0.0
    %1830 = vmatprep.subr.mxu0 0.0
    %1831 = vmatpush2.msra.mxu0 0.0
    %1832 = vmatprep.subr.mxu0 0.0
    %1833 = vmatpush2.msra.mxu0 0.0
    %1834 = vmatprep.mubr.f32.mxu0 0.0
    %v1835 = vand.u32 %v1606, 4294901760
    %v1836 = vsub.f32 %v1606, %v1835
    %1837 = vmatmul.mubr.f32.gmra.mxu0 %v1836
    %v1838 = vpop.f32.mrf.mxu0
    %v1839 = vadd.f32 %v1763, %v1838
    %v1840 = vpop.f32.mrf.mxu0
    %1841 = vdwg.mxu0
    %1842 = vmatprep.subr.mxu0 0.0
    %1843 = vmatpush1.msra.mxu0 0.0
    %1844 = vmatprep.subr.mxu0 0.0
    %1845 = vmatpush1.msra.mxu0 0.0
    %1846 = vmatprep.subr.mxu0 0.0
    %1847 = vmatpush1.msra.mxu0 0.0
    %1848 = vmatprep.subr.mxu0 0.0
    %1849 = vmatpush1.msra.mxu0 0.0
    %1850 = vmatprep.subr.mxu0 0.0
    %1851 = vmatpush1.msra.mxu0 0.0
    %1852 = vmatprep.subr.mxu0 0.0
    %1853 = vmatpush1.msra.mxu0 0.0
    %1854 = vmatprep.subr.mxu0 0.0
    %1855 = vmatpush1.msra.mxu0 0.0
    %1856 = vmatprep.subr.mxu0 0.0
    %1857 = vmatpush1.msra.mxu0 0.0
    %1858 = vmatprep.subr.mxu0 0.0
    %1859 = vmatpush1.msra.mxu0 0.0
    %1860 = vmatprep.subr.mxu0 0.0
    %1861 = vmatpush1.msra.mxu0 0.0
    %1862 = vmatprep.subr.mxu0 0.0
    %1863 = vmatpush1.msra.mxu0 0.0
    %1864 = vmatprep.subr.mxu0 0.0
    %1865 = vmatpush1.msra.mxu0 0.0
    %1866 = vmatprep.subr.mxu0 0.0
    %1867 = vmatpush1.msra.mxu0 0.0
    %1868 = vmatprep.subr.mxu0 0.0
    %1869 = vmatpush1.msra.mxu0 0.0
    %1870 = vmatprep.subr.mxu0 0.0
    %v1871 = vand.u32 %v1603, 4294901760
    %1872 = vmatpush1.msra.mxu0 %v1871
    %1873 = vmatprep.subr.mxu0 0.0
    %v1874 = vand.u32 %v1602, 4294901760
    %1875 = vmatpush1.msra.mxu0 %v1874
    %1876 = vmatprep.subr.mxu0 0.0
    %1877 = vmatpush2.msra.mxu0 0.0
    %1878 = vmatprep.subr.mxu0 0.0
    %1879 = vmatpush2.msra.mxu0 0.0
    %1880 = vmatprep.subr.mxu0 0.0
    %1881 = vmatpush2.msra.mxu0 0.0
    %1882 = vmatprep.subr.mxu0 0.0
    %1883 = vmatpush2.msra.mxu0 0.0
    %1884 = vmatprep.subr.mxu0 0.0
    %1885 = vmatpush2.msra.mxu0 0.0
    %1886 = vmatprep.subr.mxu0 0.0
    %1887 = vmatpush2.msra.mxu0 0.0
    %1888 = vmatprep.subr.mxu0 0.0
    %1889 = vmatpush2.msra.mxu0 0.0
    %1890 = vmatprep.subr.mxu0 0.0
    %1891 = vmatpush2.msra.mxu0 0.0
    %1892 = vmatprep.subr.mxu0 0.0
    %1893 = vmatpush2.msra.mxu0 0.0
    %1894 = vmatprep.subr.mxu0 0.0
    %1895 = vmatpush2.msra.mxu0 0.0
    %1896 = vmatprep.subr.mxu0 0.0
    %1897 = vmatpush2.msra.mxu0 0.0
    %1898 = vmatprep.subr.mxu0 0.0
    %1899 = vmatpush2.msra.mxu0 0.0
    %1900 = vmatprep.subr.mxu0 0.0
    %1901 = vmatpush2.msra.mxu0 0.0
    %1902 = vmatprep.subr.mxu0 0.0
    %1903 = vmatpush2.msra.mxu0 0.0
    %1904 = vmatprep.subr.mxu0 0.0
    %1905 = vmatpush2.msra.mxu0 0.0
    %1906 = vmatprep.subr.mxu0 0.0
    %1907 = vmatpush2.msra.mxu0 0.0
    %1908 = vmatprep.mubr.f32.mxu0 0.0
    %v1909 = vand.u32 %v1606, 4294901760
    %v1910 = vsub.f32 %v1606, %v1909
    %v1911 = vand.u32 %v1910, 4294901760
    %1912 = vmatmul.mubr.f32.gmra.mxu0 %v1911
    %v1913 = vpop.f32.mrf.mxu0
    %v1914 = vadd.f32 %v1839, %v1913
    %v1915 = vpop.f32.mrf.mxu0
    %1916 = vdwg.mxu0
    %1917 = vmatprep.subr.mxu0 0.0
    %1918 = vmatpush1.msra.mxu0 0.0
    %1919 = vmatprep.subr.mxu0 0.0
    %1920 = vmatpush1.msra.mxu0 0.0
    %1921 = vmatprep.subr.mxu0 0.0
    %1922 = vmatpush1.msra.mxu0 0.0
    %1923 = vmatprep.subr.mxu0 0.0
    %1924 = vmatpush1.msra.mxu0 0.0
    %1925 = vmatprep.subr.mxu0 0.0
    %1926 = vmatpush1.msra.mxu0 0.0
    %1927 = vmatprep.subr.mxu0 0.0
    %1928 = vmatpush1.msra.mxu0 0.0
    %1929 = vmatprep.subr.mxu0 0.0
    %1930 = vmatpush1.msra.mxu0 0.0
    %1931 = vmatprep.subr.mxu0 0.0
    %1932 = vmatpush1.msra.mxu0 0.0
    %1933 = vmatprep.subr.mxu0 0.0
    %1934 = vmatpush1.msra.mxu0 0.0
    %1935 = vmatprep.subr.mxu0 0.0
    %1936 = vmatpush1.msra.mxu0 0.0
    %1937 = vmatprep.subr.mxu0 0.0
    %1938 = vmatpush1.msra.mxu0 0.0
    %1939 = vmatprep.subr.mxu0 0.0
    %1940 = vmatpush1.msra.mxu0 0.0
    %1941 = vmatprep.subr.mxu0 0.0
    %1942 = vmatpush1.msra.mxu0 0.0
    %1943 = vmatprep.subr.mxu0 0.0
    %1944 = vmatpush1.msra.mxu0 0.0
    %1945 = vmatprep.subr.mxu0 0.0
    %v1946 = vand.u32 %v1603, 4294901760
    %v1947 = vsub.f32 %v1603, %v1946
    %v1948 = vand.u32 %v1947, 4294901760
    %1949 = vmatpush1.msra.mxu0 %v1948
    %1950 = vmatprep.subr.mxu0 0.0
    %v1951 = vand.u32 %v1602, 4294901760
    %v1952 = vsub.f32 %v1602, %v1951
    %v1953 = vand.u32 %v1952, 4294901760
    %1954 = vmatpush1.msra.mxu0 %v1953
    %1955 = vmatprep.subr.mxu0 0.0
    %1956 = vmatpush2.msra.mxu0 0.0
    %1957 = vmatprep.subr.mxu0 0.0
    %1958 = vmatpush2.msra.mxu0 0.0
    %1959 = vmatprep.subr.mxu0 0.0
    %1960 = vmatpush2.msra.mxu0 0.0
    %1961 = vmatprep.subr.mxu0 0.0
    %1962 = vmatpush2.msra.mxu0 0.0
    %1963 = vmatprep.subr.mxu0 0.0
    %1964 = vmatpush2.msra.mxu0 0.0
    %1965 = vmatprep.subr.mxu0 0.0
    %1966 = vmatpush2.msra.mxu0 0.0
    %1967 = vmatprep.subr.mxu0 0.0
    %1968 = vmatpush2.msra.mxu0 0.0
    %1969 = vmatprep.subr.mxu0 0.0
    %1970 = vmatpush2.msra.mxu0 0.0
    %1971 = vmatprep.subr.mxu0 0.0
    %1972 = vmatpush2.msra.mxu0 0.0
    %1973 = vmatprep.subr.mxu0 0.0
    %1974 = vmatpush2.msra.mxu0 0.0
    %1975 = vmatprep.subr.mxu0 0.0
    %1976 = vmatpush2.msra.mxu0 0.0
    %1977 = vmatprep.subr.mxu0 0.0
    %1978 = vmatpush2.msra.mxu0 0.0
    %1979 = vmatprep.subr.mxu0 0.0
    %1980 = vmatpush2.msra.mxu0 0.0
    %1981 = vmatprep.subr.mxu0 0.0
    %1982 = vmatpush2.msra.mxu0 0.0
    %1983 = vmatprep.subr.mxu0 0.0
    %1984 = vmatpush2.msra.mxu0 0.0
    %1985 = vmatprep.subr.mxu0 0.0
    %1986 = vmatpush2.msra.mxu0 0.0
    %1987 = vmatprep.mubr.f32.mxu0 0.0
    %v1988 = vand.u32 %v1606, 4294901760
    %1989 = vmatmul.mubr.f32.gmra.mxu0 %v1988
    %v1990 = vpop.f32.mrf.mxu0
    %v1991 = vadd.f32 %v1914, %v1990
    %v1992 = vpop.f32.mrf.mxu0
    %1993 = vdwg.mxu0
    %1994 = vmatprep.subr.mxu0 0.0
    %1995 = vmatpush1.msra.mxu0 0.0
    %1996 = vmatprep.subr.mxu0 0.0
    %1997 = vmatpush1.msra.mxu0 0.0
    %1998 = vmatprep.subr.mxu0 0.0
    %1999 = vmatpush1.msra.mxu0 0.0
    %2000 = vmatprep.subr.mxu0 0.0
    %2001 = vmatpush1.msra.mxu0 0.0
    %2002 = vmatprep.subr.mxu0 0.0
    %2003 = vmatpush1.msra.mxu0 0.0
    %2004 = vmatprep.subr.mxu0 0.0
    %2005 = vmatpush1.msra.mxu0 0.0
    %2006 = vmatprep.subr.mxu0 0.0
    %2007 = vmatpush1.msra.mxu0 0.0
    %2008 = vmatprep.subr.mxu0 0.0
    %2009 = vmatpush1.msra.mxu0 0.0
    %2010 = vmatprep.subr.mxu0 0.0
    %2011 = vmatpush1.msra.mxu0 0.0
    %2012 = vmatprep.subr.mxu0 0.0
    %2013 = vmatpush1.msra.mxu0 0.0
    %2014 = vmatprep.subr.mxu0 0.0
    %2015 = vmatpush1.msra.mxu0 0.0
    %2016 = vmatprep.subr.mxu0 0.0
    %2017 = vmatpush1.msra.mxu0 0.0
    %2018 = vmatprep.subr.mxu0 0.0
    %2019 = vmatpush1.msra.mxu0 0.0
    %2020 = vmatprep.subr.mxu0 0.0
    %2021 = vmatpush1.msra.mxu0 0.0
    %2022 = vmatprep.subr.mxu0 0.0
    %v2023 = vand.u32 %v1603, 4294901760
    %2024 = vmatpush1.msra.mxu0 %v2023
    %2025 = vmatprep.subr.mxu0 0.0
    %v2026 = vand.u32 %v1602, 4294901760
    %2027 = vmatpush1.msra.mxu0 %v2026
    %2028 = vmatprep.subr.mxu0 0.0
    %2029 = vmatpush2.msra.mxu0 0.0
    %2030 = vmatprep.subr.mxu0 0.0
    %2031 = vmatpush2.msra.mxu0 0.0
    %2032 = vmatprep.subr.mxu0 0.0
    %2033 = vmatpush2.msra.mxu0 0.0
    %2034 = vmatprep.subr.mxu0 0.0
    %2035 = vmatpush2.msra.mxu0 0.0
    %2036 = vmatprep.subr.mxu0 0.0
    %2037 = vmatpush2.msra.mxu0 0.0
    %2038 = vmatprep.subr.mxu0 0.0
    %2039 = vmatpush2.msra.mxu0 0.0
    %2040 = vmatprep.subr.mxu0 0.0
    %2041 = vmatpush2.msra.mxu0 0.0
    %2042 = vmatprep.subr.mxu0 0.0
    %2043 = vmatpush2.msra.mxu0 0.0
    %2044 = vmatprep.subr.mxu0 0.0
    %2045 = vmatpush2.msra.mxu0 0.0
    %2046 = vmatprep.subr.mxu0 0.0
    %2047 = vmatpush2.msra.mxu0 0.0
    %2048 = vmatprep.subr.mxu0 0.0
    %2049 = vmatpush2.msra.mxu0 0.0
    %2050 = vmatprep.subr.mxu0 0.0
    %2051 = vmatpush2.msra.mxu0 0.0
    %2052 = vmatprep.subr.mxu0 0.0
    %2053 = vmatpush2.msra.mxu0 0.0
    %2054 = vmatprep.subr.mxu0 0.0
    %2055 = vmatpush2.msra.mxu0 0.0
    %2056 = vmatprep.subr.mxu0 0.0
    %2057 = vmatpush2.msra.mxu0 0.0
    %2058 = vmatprep.subr.mxu0 0.0
    %2059 = vmatpush2.msra.mxu0 0.0
    %2060 = vmatprep.mubr.f32.mxu0 0.0
    %v2061 = vand.u32 %v1606, 4294901760
    %2062 = vmatmul.mubr.f32.gmra.mxu0 %v2061
    %v2063 = vpop.f32.mrf.mxu0
    %v2064 = vadd.f32 %v1991, %v2063
    %v2065 = vpop.f32.mrf.mxu0
    %2066 = vdwg.mxu0
    %v2068 = vsel %vm121, %v110, 0
    %2070 = vmatprep.subr.mxu0 0.0
    %2071 = vmatpush1.msra.mxu0 0.0
    %2072 = vmatprep.subr.mxu0 0.0
    %2073 = vmatpush1.msra.mxu0 0.0
    %2074 = vmatprep.subr.mxu0 0.0
    %2075 = vmatpush1.msra.mxu0 0.0
    %2076 = vmatprep.subr.mxu0 0.0
    %2077 = vmatpush1.msra.mxu0 0.0
    %2078 = vmatprep.subr.mxu0 0.0
    %2079 = vmatpush1.msra.mxu0 0.0
    %2080 = vmatprep.subr.mxu0 0.0
    %2081 = vmatpush1.msra.mxu0 0.0
    %2082 = vmatprep.subr.mxu0 0.0
    %2083 = vmatpush1.msra.mxu0 0.0
    %2084 = vmatprep.subr.mxu0 0.0
    %2085 = vmatpush1.msra.mxu0 0.0
    %2086 = vmatprep.subr.mxu0 0.0
    %2087 = vmatpush1.msra.mxu0 0.0
    %2088 = vmatprep.subr.mxu0 0.0
    %2089 = vmatpush1.msra.mxu0 0.0
    %2090 = vmatprep.subr.mxu0 0.0
    %v2091 = vand.u32 %v2068, 4294901760
    %2092 = vmatpush1.msra.mxu0 %v2091
    %2093 = vmatprep.subr.mxu0 0.0
    %v2094 = vand.u32 %v109, 4294901760
    %2095 = vmatpush1.msra.mxu0 %v2094
    %2096 = vmatprep.subr.mxu0 0.0
    %v2097 = vand.u32 %v108, 4294901760
    %2098 = vmatpush1.msra.mxu0 %v2097
    %2099 = vmatprep.subr.mxu0 0.0
    %v2100 = vand.u32 %v107, 4294901760
    %2101 = vmatpush1.msra.mxu0 %v2100
    %2102 = vmatprep.subr.mxu0 0.0
    %v2103 = vand.u32 %v106, 4294901760
    %2104 = vmatpush1.msra.mxu0 %v2103
    %2105 = vmatprep.subr.mxu0 0.0
    %v2106 = vand.u32 %v105, 4294901760
    %2107 = vmatpush1.msra.mxu0 %v2106
    %2108 = vmatprep.subr.mxu0 0.0
    %2109 = vmatpush2.msra.mxu0 0.0
    %2110 = vmatprep.subr.mxu0 0.0
    %2111 = vmatpush2.msra.mxu0 0.0
    %2112 = vmatprep.subr.mxu0 0.0
    %2113 = vmatpush2.msra.mxu0 0.0
    %2114 = vmatprep.subr.mxu0 0.0
    %2115 = vmatpush2.msra.mxu0 0.0
    %2116 = vmatprep.subr.mxu0 0.0
    %2117 = vmatpush2.msra.mxu0 0.0
    %2118 = vmatprep.subr.mxu0 0.0
    %2119 = vmatpush2.msra.mxu0 0.0
    %2120 = vmatprep.subr.mxu0 0.0
    %2121 = vmatpush2.msra.mxu0 0.0
    %2122 = vmatprep.subr.mxu0 0.0
    %2123 = vmatpush2.msra.mxu0 0.0
    %2124 = vmatprep.subr.mxu0 0.0
    %2125 = vmatpush2.msra.mxu0 0.0
    %2126 = vmatprep.subr.mxu0 0.0
    %2127 = vmatpush2.msra.mxu0 0.0
    %2128 = vmatprep.subr.mxu0 0.0
    %2129 = vmatpush2.msra.mxu0 0.0
    %2130 = vmatprep.subr.mxu0 0.0
    %2131 = vmatpush2.msra.mxu0 0.0
    %2132 = vmatprep.subr.mxu0 0.0
    %2133 = vmatpush2.msra.mxu0 0.0
    %2134 = vmatprep.subr.mxu0 0.0
    %2135 = vmatpush2.msra.mxu0 0.0
    %2136 = vmatprep.subr.mxu0 0.0
    %2137 = vmatpush2.msra.mxu0 0.0
    %2138 = vmatprep.subr.mxu0 0.0
    %2139 = vmatpush2.msra.mxu0 0.0
    %2140 = vmatprep.mubr.f32.mxu0 0.0
    %v2141 = vand.u32 %v119, 4294901760
    %v2142 = vsub.f32 %v119, %v2141
    %v2143 = vand.u32 %v2142, 4294901760
    %v2144 = vsub.f32 %v2142, %v2143
    %v2145 = vand.u32 %v2144, 4294901760
    %2146 = vmatmul.mubr.f32.gmra.mxu0 %v2145
    %v2147 = vpop.f32.mrf.mxu0
    %v2148 = vadd.f32 %v2064, %v2147
    %v2149 = vpop.f32.mrf.mxu0
    %2150 = vdwg.mxu0
    %2151 = vmatprep.subr.mxu0 0.0
    %2152 = vmatpush1.msra.mxu0 0.0
    %2153 = vmatprep.subr.mxu0 0.0
    %2154 = vmatpush1.msra.mxu0 0.0
    %2155 = vmatprep.subr.mxu0 0.0
    %2156 = vmatpush1.msra.mxu0 0.0
    %2157 = vmatprep.subr.mxu0 0.0
    %2158 = vmatpush1.msra.mxu0 0.0
    %2159 = vmatprep.subr.mxu0 0.0
    %2160 = vmatpush1.msra.mxu0 0.0
    %2161 = vmatprep.subr.mxu0 0.0
    %2162 = vmatpush1.msra.mxu0 0.0
    %2163 = vmatprep.subr.mxu0 0.0
    %2164 = vmatpush1.msra.mxu0 0.0
    %2165 = vmatprep.subr.mxu0 0.0
    %2166 = vmatpush1.msra.mxu0 0.0
    %2167 = vmatprep.subr.mxu0 0.0
    %2168 = vmatpush1.msra.mxu0 0.0
    %2169 = vmatprep.subr.mxu0 0.0
    %2170 = vmatpush1.msra.mxu0 0.0
    %2171 = vmatprep.subr.mxu0 0.0
    %v2172 = vand.u32 %v2068, 4294901760
    %v2173 = vsub.f32 %v2068, %v2172
    %v2174 = vand.u32 %v2173, 4294901760
    %v2175 = vsub.f32 %v2173, %v2174
    %v2176 = vand.u32 %v2175, 4294901760
    %2177 = vmatpush1.msra.mxu0 %v2176
    %2178 = vmatprep.subr.mxu0 0.0
    %v2179 = vand.u32 %v109, 4294901760
    %v2180 = vsub.f32 %v109, %v2179
    %v2181 = vand.u32 %v2180, 4294901760
    %v2182 = vsub.f32 %v2180, %v2181
    %v2183 = vand.u32 %v2182, 4294901760
    %2184 = vmatpush1.msra.mxu0 %v2183
    %2185 = vmatprep.subr.mxu0 0.0
    %v2186 = vand.u32 %v108, 4294901760
    %v2187 = vsub.f32 %v108, %v2186
    %v2188 = vand.u32 %v2187, 4294901760
    %v2189 = vsub.f32 %v2187, %v2188
    %v2190 = vand.u32 %v2189, 4294901760
    %2191 = vmatpush1.msra.mxu0 %v2190
    %2192 = vmatprep.subr.mxu0 0.0
    %v2193 = vand.u32 %v107, 4294901760
    %v2194 = vsub.f32 %v107, %v2193
    %v2195 = vand.u32 %v2194, 4294901760
    %v2196 = vsub.f32 %v2194, %v2195
    %v2197 = vand.u32 %v2196, 4294901760
    %2198 = vmatpush1.msra.mxu0 %v2197
    %2199 = vmatprep.subr.mxu0 0.0
    %v2200 = vand.u32 %v106, 4294901760
    %v2201 = vsub.f32 %v106, %v2200
    %v2202 = vand.u32 %v2201, 4294901760
    %v2203 = vsub.f32 %v2201, %v2202
    %v2204 = vand.u32 %v2203, 4294901760
    %2205 = vmatpush1.msra.mxu0 %v2204
    %2206 = vmatprep.subr.mxu0 0.0
    %v2207 = vand.u32 %v105, 4294901760
    %v2208 = vsub.f32 %v105, %v2207
    %v2209 = vand.u32 %v2208, 4294901760
    %v2210 = vsub.f32 %v2208, %v2209
    %v2211 = vand.u32 %v2210, 4294901760
    %2212 = vmatpush1.msra.mxu0 %v2211
    %2213 = vmatprep.subr.mxu0 0.0
    %2214 = vmatpush2.msra.mxu0 0.0
    %2215 = vmatprep.subr.mxu0 0.0
    %2216 = vmatpush2.msra.mxu0 0.0
    %2217 = vmatprep.subr.mxu0 0.0
    %2218 = vmatpush2.msra.mxu0 0.0
    %2219 = vmatprep.subr.mxu0 0.0
    %2220 = vmatpush2.msra.mxu0 0.0
    %2221 = vmatprep.subr.mxu0 0.0
    %2222 = vmatpush2.msra.mxu0 0.0
    %2223 = vmatprep.subr.mxu0 0.0
    %2224 = vmatpush2.msra.mxu0 0.0
    %2225 = vmatprep.subr.mxu0 0.0
    %2226 = vmatpush2.msra.mxu0 0.0
    %2227 = vmatprep.subr.mxu0 0.0
    %2228 = vmatpush2.msra.mxu0 0.0
    %2229 = vmatprep.subr.mxu0 0.0
    %2230 = vmatpush2.msra.mxu0 0.0
    %2231 = vmatprep.subr.mxu0 0.0
    %2232 = vmatpush2.msra.mxu0 0.0
    %2233 = vmatprep.subr.mxu0 0.0
    %2234 = vmatpush2.msra.mxu0 0.0
    %2235 = vmatprep.subr.mxu0 0.0
    %2236 = vmatpush2.msra.mxu0 0.0
    %2237 = vmatprep.subr.mxu0 0.0
    %2238 = vmatpush2.msra.mxu0 0.0
    %2239 = vmatprep.subr.mxu0 0.0
    %2240 = vmatpush2.msra.mxu0 0.0
    %2241 = vmatprep.subr.mxu0 0.0
    %2242 = vmatpush2.msra.mxu0 0.0
    %2243 = vmatprep.subr.mxu0 0.0
    %2244 = vmatpush2.msra.mxu0 0.0
    %2245 = vmatprep.mubr.f32.mxu0 0.0
    %v2246 = vand.u32 %v119, 4294901760
    %2247 = vmatmul.mubr.f32.gmra.mxu0 %v2246
    %v2248 = vpop.f32.mrf.mxu0
    %v2249 = vadd.f32 %v2148, %v2248
    %v2250 = vpop.f32.mrf.mxu0
    %2251 = vdwg.mxu0
    %2252 = vmatprep.subr.mxu0 0.0
    %2253 = vmatpush1.msra.mxu0 0.0
    %2254 = vmatprep.subr.mxu0 0.0
    %2255 = vmatpush1.msra.mxu0 0.0
    %2256 = vmatprep.subr.mxu0 0.0
    %2257 = vmatpush1.msra.mxu0 0.0
    %2258 = vmatprep.subr.mxu0 0.0
    %2259 = vmatpush1.msra.mxu0 0.0
    %2260 = vmatprep.subr.mxu0 0.0
    %2261 = vmatpush1.msra.mxu0 0.0
    %2262 = vmatprep.subr.mxu0 0.0
    %2263 = vmatpush1.msra.mxu0 0.0
    %2264 = vmatprep.subr.mxu0 0.0
    %2265 = vmatpush1.msra.mxu0 0.0
    %2266 = vmatprep.subr.mxu0 0.0
    %2267 = vmatpush1.msra.mxu0 0.0
    %2268 = vmatprep.subr.mxu0 0.0
    %2269 = vmatpush1.msra.mxu0 0.0
    %2270 = vmatprep.subr.mxu0 0.0
    %2271 = vmatpush1.msra.mxu0 0.0
    %2272 = vmatprep.subr.mxu0 0.0
    %v2273 = vand.u32 %v2068, 4294901760
    %v2274 = vsub.f32 %v2068, %v2273
    %2275 = vmatpush1.msra.mxu0 %v2274
    %2276 = vmatprep.subr.mxu0 0.0
    %v2277 = vand.u32 %v109, 4294901760
    %v2278 = vsub.f32 %v109, %v2277
    %2279 = vmatpush1.msra.mxu0 %v2278
    %2280 = vmatprep.subr.mxu0 0.0
    %v2281 = vand.u32 %v108, 4294901760
    %v2282 = vsub.f32 %v108, %v2281
    %2283 = vmatpush1.msra.mxu0 %v2282
    %2284 = vmatprep.subr.mxu0 0.0
    %v2285 = vand.u32 %v107, 4294901760
    %v2286 = vsub.f32 %v107, %v2285
    %2287 = vmatpush1.msra.mxu0 %v2286
    %2288 = vmatprep.subr.mxu0 0.0
    %v2289 = vand.u32 %v106, 4294901760
    %v2290 = vsub.f32 %v106, %v2289
    %2291 = vmatpush1.msra.mxu0 %v2290
    %2292 = vmatprep.subr.mxu0 0.0
    %v2293 = vand.u32 %v105, 4294901760
    %v2294 = vsub.f32 %v105, %v2293
    %2295 = vmatpush1.msra.mxu0 %v2294
    %2296 = vmatprep.subr.mxu0 0.0
    %2297 = vmatpush2.msra.mxu0 0.0
    %2298 = vmatprep.subr.mxu0 0.0
    %2299 = vmatpush2.msra.mxu0 0.0
    %2300 = vmatprep.subr.mxu0 0.0
    %2301 = vmatpush2.msra.mxu0 0.0
    %2302 = vmatprep.subr.mxu0 0.0
    %2303 = vmatpush2.msra.mxu0 0.0
    %2304 = vmatprep.subr.mxu0 0.0
    %2305 = vmatpush2.msra.mxu0 0.0
    %2306 = vmatprep.subr.mxu0 0.0
    %2307 = vmatpush2.msra.mxu0 0.0
    %2308 = vmatprep.subr.mxu0 0.0
    %2309 = vmatpush2.msra.mxu0 0.0
    %2310 = vmatprep.subr.mxu0 0.0
    %2311 = vmatpush2.msra.mxu0 0.0
    %2312 = vmatprep.subr.mxu0 0.0
    %2313 = vmatpush2.msra.mxu0 0.0
    %2314 = vmatprep.subr.mxu0 0.0
    %2315 = vmatpush2.msra.mxu0 0.0
    %2316 = vmatprep.subr.mxu0 0.0
    %2317 = vmatpush2.msra.mxu0 0.0
    %2318 = vmatprep.subr.mxu0 0.0
    %2319 = vmatpush2.msra.mxu0 0.0
    %2320 = vmatprep.subr.mxu0 0.0
    %2321 = vmatpush2.msra.mxu0 0.0
    %2322 = vmatprep.subr.mxu0 0.0
    %2323 = vmatpush2.msra.mxu0 0.0
    %2324 = vmatprep.subr.mxu0 0.0
    %2325 = vmatpush2.msra.mxu0 0.0
    %2326 = vmatprep.subr.mxu0 0.0
    %2327 = vmatpush2.msra.mxu0 0.0
    %2328 = vmatprep.mubr.f32.mxu0 0.0
    %v2329 = vand.u32 %v119, 4294901760
    %v2330 = vsub.f32 %v119, %v2329
    %2331 = vmatmul.mubr.f32.gmra.mxu0 %v2330
    %v2332 = vpop.f32.mrf.mxu0
    %v2333 = vadd.f32 %v2249, %v2332
    %v2334 = vpop.f32.mrf.mxu0
    %2335 = vdwg.mxu0
    %2336 = vmatprep.subr.mxu0 0.0
    %2337 = vmatpush1.msra.mxu0 0.0
    %2338 = vmatprep.subr.mxu0 0.0
    %2339 = vmatpush1.msra.mxu0 0.0
    %2340 = vmatprep.subr.mxu0 0.0
    %2341 = vmatpush1.msra.mxu0 0.0
    %2342 = vmatprep.subr.mxu0 0.0
    %2343 = vmatpush1.msra.mxu0 0.0
    %2344 = vmatprep.subr.mxu0 0.0
    %2345 = vmatpush1.msra.mxu0 0.0
    %2346 = vmatprep.subr.mxu0 0.0
    %2347 = vmatpush1.msra.mxu0 0.0
    %2348 = vmatprep.subr.mxu0 0.0
    %2349 = vmatpush1.msra.mxu0 0.0
    %2350 = vmatprep.subr.mxu0 0.0
    %2351 = vmatpush1.msra.mxu0 0.0
    %2352 = vmatprep.subr.mxu0 0.0
    %2353 = vmatpush1.msra.mxu0 0.0
    %2354 = vmatprep.subr.mxu0 0.0
    %2355 = vmatpush1.msra.mxu0 0.0
    %2356 = vmatprep.subr.mxu0 0.0
    %v2357 = vand.u32 %v2068, 4294901760
    %2358 = vmatpush1.msra.mxu0 %v2357
    %2359 = vmatprep.subr.mxu0 0.0
    %v2360 = vand.u32 %v109, 4294901760
    %2361 = vmatpush1.msra.mxu0 %v2360
    %2362 = vmatprep.subr.mxu0 0.0
    %v2363 = vand.u32 %v108, 4294901760
    %2364 = vmatpush1.msra.mxu0 %v2363
    %2365 = vmatprep.subr.mxu0 0.0
    %v2366 = vand.u32 %v107, 4294901760
    %2367 = vmatpush1.msra.mxu0 %v2366
    %2368 = vmatprep.subr.mxu0 0.0
    %v2369 = vand.u32 %v106, 4294901760
    %2370 = vmatpush1.msra.mxu0 %v2369
    %2371 = vmatprep.subr.mxu0 0.0
    %v2372 = vand.u32 %v105, 4294901760
    %2373 = vmatpush1.msra.mxu0 %v2372
    %2374 = vmatprep.subr.mxu0 0.0
    %2375 = vmatpush2.msra.mxu0 0.0
    %2376 = vmatprep.subr.mxu0 0.0
    %2377 = vmatpush2.msra.mxu0 0.0
    %2378 = vmatprep.subr.mxu0 0.0
    %2379 = vmatpush2.msra.mxu0 0.0
    %2380 = vmatprep.subr.mxu0 0.0
    %2381 = vmatpush2.msra.mxu0 0.0
    %2382 = vmatprep.subr.mxu0 0.0
    %2383 = vmatpush2.msra.mxu0 0.0
    %2384 = vmatprep.subr.mxu0 0.0
    %2385 = vmatpush2.msra.mxu0 0.0
    %2386 = vmatprep.subr.mxu0 0.0
    %2387 = vmatpush2.msra.mxu0 0.0
    %2388 = vmatprep.subr.mxu0 0.0
    %2389 = vmatpush2.msra.mxu0 0.0
    %2390 = vmatprep.subr.mxu0 0.0
    %2391 = vmatpush2.msra.mxu0 0.0
    %2392 = vmatprep.subr.mxu0 0.0
    %2393 = vmatpush2.msra.mxu0 0.0
    %2394 = vmatprep.subr.mxu0 0.0
    %2395 = vmatpush2.msra.mxu0 0.0
    %2396 = vmatprep.subr.mxu0 0.0
    %2397 = vmatpush2.msra.mxu0 0.0
    %2398 = vmatprep.subr.mxu0 0.0
    %2399 = vmatpush2.msra.mxu0 0.0
    %2400 = vmatprep.subr.mxu0 0.0
    %2401 = vmatpush2.msra.mxu0 0.0
    %2402 = vmatprep.subr.mxu0 0.0
    %2403 = vmatpush2.msra.mxu0 0.0
    %2404 = vmatprep.subr.mxu0 0.0
    %2405 = vmatpush2.msra.mxu0 0.0
    %2406 = vmatprep.mubr.f32.mxu0 0.0
    %v2407 = vand.u32 %v119, 4294901760
    %v2408 = vsub.f32 %v119, %v2407
    %v2409 = vand.u32 %v2408, 4294901760
    %2410 = vmatmul.mubr.f32.gmra.mxu0 %v2409
    %v2411 = vpop.f32.mrf.mxu0
    %v2412 = vadd.f32 %v2333, %v2411
    %v2413 = vpop.f32.mrf.mxu0
    %2414 = vdwg.mxu0
    %2415 = vmatprep.subr.mxu0 0.0
    %2416 = vmatpush1.msra.mxu0 0.0
    %2417 = vmatprep.subr.mxu0 0.0
    %2418 = vmatpush1.msra.mxu0 0.0
    %2419 = vmatprep.subr.mxu0 0.0
    %2420 = vmatpush1.msra.mxu0 0.0
    %2421 = vmatprep.subr.mxu0 0.0
    %2422 = vmatpush1.msra.mxu0 0.0
    %2423 = vmatprep.subr.mxu0 0.0
    %2424 = vmatpush1.msra.mxu0 0.0
    %2425 = vmatprep.subr.mxu0 0.0
    %2426 = vmatpush1.msra.mxu0 0.0
    %2427 = vmatprep.subr.mxu0 0.0
    %2428 = vmatpush1.msra.mxu0 0.0
    %2429 = vmatprep.subr.mxu0 0.0
    %2430 = vmatpush1.msra.mxu0 0.0
    %2431 = vmatprep.subr.mxu0 0.0
    %2432 = vmatpush1.msra.mxu0 0.0
    %2433 = vmatprep.subr.mxu0 0.0
    %2434 = vmatpush1.msra.mxu0 0.0
    %2435 = vmatprep.subr.mxu0 0.0
    %v2436 = vand.u32 %v2068, 4294901760
    %v2437 = vsub.f32 %v2068, %v2436
    %v2438 = vand.u32 %v2437, 4294901760
    %2439 = vmatpush1.msra.mxu0 %v2438
    %2440 = vmatprep.subr.mxu0 0.0
    %v2441 = vand.u32 %v109, 4294901760
    %v2442 = vsub.f32 %v109, %v2441
    %v2443 = vand.u32 %v2442, 4294901760
    %2444 = vmatpush1.msra.mxu0 %v2443
    %2445 = vmatprep.subr.mxu0 0.0
    %v2446 = vand.u32 %v108, 4294901760
    %v2447 = vsub.f32 %v108, %v2446
    %v2448 = vand.u32 %v2447, 4294901760
    %2449 = vmatpush1.msra.mxu0 %v2448
    %2450 = vmatprep.subr.mxu0 0.0
    %v2451 = vand.u32 %v107, 4294901760
    %v2452 = vsub.f32 %v107, %v2451
    %v2453 = vand.u32 %v2452, 4294901760
    %2454 = vmatpush1.msra.mxu0 %v2453
    %2455 = vmatprep.subr.mxu0 0.0
    %v2456 = vand.u32 %v106, 4294901760
    %v2457 = vsub.f32 %v106, %v2456
    %v2458 = vand.u32 %v2457, 4294901760
    %2459 = vmatpush1.msra.mxu0 %v2458
    %2460 = vmatprep.subr.mxu0 0.0
    %v2461 = vand.u32 %v105, 4294901760
    %v2462 = vsub.f32 %v105, %v2461
    %v2463 = vand.u32 %v2462, 4294901760
    %2464 = vmatpush1.msra.mxu0 %v2463
    %2465 = vmatprep.subr.mxu0 0.0
    %2466 = vmatpush2.msra.mxu0 0.0
    %2467 = vmatprep.subr.mxu0 0.0
    %2468 = vmatpush2.msra.mxu0 0.0
    %2469 = vmatprep.subr.mxu0 0.0
    %2470 = vmatpush2.msra.mxu0 0.0
    %2471 = vmatprep.subr.mxu0 0.0
    %2472 = vmatpush2.msra.mxu0 0.0
    %2473 = vmatprep.subr.mxu0 0.0
    %2474 = vmatpush2.msra.mxu0 0.0
    %2475 = vmatprep.subr.mxu0 0.0
    %2476 = vmatpush2.msra.mxu0 0.0
    %2477 = vmatprep.subr.mxu0 0.0
    %2478 = vmatpush2.msra.mxu0 0.0
    %2479 = vmatprep.subr.mxu0 0.0
    %2480 = vmatpush2.msra.mxu0 0.0
    %2481 = vmatprep.subr.mxu0 0.0
    %2482 = vmatpush2.msra.mxu0 0.0
    %2483 = vmatprep.subr.mxu0 0.0
    %2484 = vmatpush2.msra.mxu0 0.0
    %2485 = vmatprep.subr.mxu0 0.0
    %2486 = vmatpush2.msra.mxu0 0.0
    %2487 = vmatprep.subr.mxu0 0.0
    %2488 = vmatpush2.msra.mxu0 0.0
    %2489 = vmatprep.subr.mxu0 0.0
    %2490 = vmatpush2.msra.mxu0 0.0
    %2491 = vmatprep.subr.mxu0 0.0
    %2492 = vmatpush2.msra.mxu0 0.0
    %2493 = vmatprep.subr.mxu0 0.0
    %2494 = vmatpush2.msra.mxu0 0.0
    %2495 = vmatprep.subr.mxu0 0.0
    %2496 = vmatpush2.msra.mxu0 0.0
    %2497 = vmatprep.mubr.f32.mxu0 0.0
    %v2498 = vand.u32 %v119, 4294901760
    %2499 = vmatmul.mubr.f32.gmra.mxu0 %v2498
    %v2500 = vpop.f32.mrf.mxu0
    %v2501 = vadd.f32 %v2412, %v2500
    %v2502 = vpop.f32.mrf.mxu0
    %2503 = vdwg.mxu0
    %2504 = vmatprep.subr.mxu0 0.0
    %2505 = vmatpush1.msra.mxu0 0.0
    %2506 = vmatprep.subr.mxu0 0.0
    %2507 = vmatpush1.msra.mxu0 0.0
    %2508 = vmatprep.subr.mxu0 0.0
    %2509 = vmatpush1.msra.mxu0 0.0
    %2510 = vmatprep.subr.mxu0 0.0
    %2511 = vmatpush1.msra.mxu0 0.0
    %2512 = vmatprep.subr.mxu0 0.0
    %2513 = vmatpush1.msra.mxu0 0.0
    %2514 = vmatprep.subr.mxu0 0.0
    %2515 = vmatpush1.msra.mxu0 0.0
    %2516 = vmatprep.subr.mxu0 0.0
    %2517 = vmatpush1.msra.mxu0 0.0
    %2518 = vmatprep.subr.mxu0 0.0
    %2519 = vmatpush1.msra.mxu0 0.0
    %2520 = vmatprep.subr.mxu0 0.0
    %2521 = vmatpush1.msra.mxu0 0.0
    %2522 = vmatprep.subr.mxu0 0.0
    %2523 = vmatpush1.msra.mxu0 0.0
    %2524 = vmatprep.subr.mxu0 0.0
    %v2525 = vand.u32 %v2068, 4294901760
    %2526 = vmatpush1.msra.mxu0 %v2525
    %2527 = vmatprep.subr.mxu0 0.0
    %v2528 = vand.u32 %v109, 4294901760
    %2529 = vmatpush1.msra.mxu0 %v2528
    %2530 = vmatprep.subr.mxu0 0.0
    %v2531 = vand.u32 %v108, 4294901760
    %2532 = vmatpush1.msra.mxu0 %v2531
    %2533 = vmatprep.subr.mxu0 0.0
    %v2534 = vand.u32 %v107, 4294901760
    %2535 = vmatpush1.msra.mxu0 %v2534
    %2536 = vmatprep.subr.mxu0 0.0
    %v2537 = vand.u32 %v106, 4294901760
    %2538 = vmatpush1.msra.mxu0 %v2537
    %2539 = vmatprep.subr.mxu0 0.0
    %v2540 = vand.u32 %v105, 4294901760
    %2541 = vmatpush1.msra.mxu0 %v2540
    %2542 = vmatprep.subr.mxu0 0.0
    %2543 = vmatpush2.msra.mxu0 0.0
    %2544 = vmatprep.subr.mxu0 0.0
    %2545 = vmatpush2.msra.mxu0 0.0
    %2546 = vmatprep.subr.mxu0 0.0
    %2547 = vmatpush2.msra.mxu0 0.0
    %2548 = vmatprep.subr.mxu0 0.0
    %2549 = vmatpush2.msra.mxu0 0.0
    %2550 = vmatprep.subr.mxu0 0.0
    %2551 = vmatpush2.msra.mxu0 0.0
    %2552 = vmatprep.subr.mxu0 0.0
    %2553 = vmatpush2.msra.mxu0 0.0
    %2554 = vmatprep.subr.mxu0 0.0
    %2555 = vmatpush2.msra.mxu0 0.0
    %2556 = vmatprep.subr.mxu0 0.0
    %2557 = vmatpush2.msra.mxu0 0.0
    %2558 = vmatprep.subr.mxu0 0.0
    %2559 = vmatpush2.msra.mxu0 0.0
    %2560 = vmatprep.subr.mxu0 0.0
    %2561 = vmatpush2.msra.mxu0 0.0
    %2562 = vmatprep.subr.mxu0 0.0
    %2563 = vmatpush2.msra.mxu0 0.0
    %2564 = vmatprep.subr.mxu0 0.0
    %2565 = vmatpush2.msra.mxu0 0.0
    %2566 = vmatprep.subr.mxu0 0.0
    %2567 = vmatpush2.msra.mxu0 0.0
    %2568 = vmatprep.subr.mxu0 0.0
    %2569 = vmatpush2.msra.mxu0 0.0
    %2570 = vmatprep.subr.mxu0 0.0
    %2571 = vmatpush2.msra.mxu0 0.0
    %2572 = vmatprep.subr.mxu0 0.0
    %2573 = vmatpush2.msra.mxu0 0.0
    %2574 = vmatprep.mubr.f32.mxu0 0.0
    %v2575 = vand.u32 %v119, 4294901760
    %2576 = vmatmul.mubr.f32.gmra.mxu0 %v2575
    %v2577 = vpop.f32.mrf.mxu0
    %v2578 = vadd.f32 %v2501, %v2577
    %v2579 = vpop.f32.mrf.mxu0
    %2580 = vdwg.mxu0
    %2581 = vst [vmem:[#allocation13] sm:$0xff] %v2578
    // Predicated region
    $region50: #{fn.1} parent=1 // pred_check
      _
    $region51: #{fn.1} parent=1 // pred_check_branch
      %2583 = sbr.rel (0) target = $region53
    $region52: #{fn.1} parent=1 // pred_region
      %s2585 = ssub.s32 128, 128
      %2586 = vsyncadd [#allocation4], %s2585
      %s2588 = sshll.u32 [#allocation13], 4
      %s2589 = int_to_ptr.vmem [resolvable:$true] %s2588
      %2591 = dma.vmem_to_hbm [thread:$0]  %s2589, 128, %s6, [#allocation4]
    $region53: #{fn.1} parent=1 // pred_fallthru
      _
    // Predicated region
    $region54: #{fn.1} parent=1 // pred_check
      _
    $region55: #{fn.1} parent=1 // pred_check_branch
      %2593 = sbr.rel (0) target = $region57
    $region56: #{fn.1} parent=1 // pred_region
      %2594 = dma.done [#allocation4], 128
    $region57: #{fn.1} parent=1 // pred_fallthru
      _
    %2595 = vsyncpa [#allocation3], 1
    %2596 = vsyncpa [#allocation6], 1
    %2597 = vsyncpa [#allocation9], 1
    %2598 = vsyncpa [#allocation12], 1
    %2599 = vsyncpa [#allocation4], 1

</llo_original>
